<compile_context>
chip_gen: v5e
topology: v5e:2x2
jax: 0.10.0
libtpu: 0.0.40
codegen_flags: <defaults>
</compile_context>

<pallas_src>
import functools

import jax
import jax.numpy as jnp
from jax.experimental import pallas as pl
from jax.experimental.pallas import tpu as pltpu


def _pick_rows(total, target):
    """Largest divisor of `total` that is <= target (rows per tile)."""
    target = max(1, min(total, target))
    for d in range(target, 0, -1):
        if total % d == 0:
            return d
    return total


# --------------------------------------------------------------------------- #
# Kernel 1/2: [ReLU] -> SeparableConv2d(3x3, stride 1, pad 1) -> BN -> [ReLU]  #
# --------------------------------------------------------------------------- #
def _sepconv_kernel(x_core, x_top, x_bot, dw_ref, pw_ref, sc_ref, bi_ref,
                    o_ref, scr, *, TH, W, n_t, relu_in, relu_out, mxu_dtype):
    # x_core: (TH, W, Cin)   rows [t*TH, t*TH + TH)
    # x_top : (W, Cin)       row  t*TH - 1   (zero pad row when t == 0)
    # x_bot : (W, Cin)       row  t*TH + TH  (zero pad row when t == n_t - 1)
    # scr   : (TH+2, W+2, Cin) f32 scratch = zero-padded conv input window
    t = pl.program_id(1)
    f32 = jnp.float32
    cin = x_core.shape[-1]

    def prep(v):                                   # cast once (+ optional input ReLU)
        v = v.astype(f32)
        return jnp.maximum(v, 0.0) if relu_in else v

    scr[...] = jnp.zeros(scr.shape, f32)                          # zero padding
    scr[1:TH + 1, 1:W + 1, :] = prep(x_core[...])
    scr[0, 1:W + 1, :] = jnp.where(t == 0, 0.0, prep(x_top[...]))
    scr[TH + 1, 1:W + 1, :] = jnp.where(t == n_t - 1, 0.0, prep(x_bot[...]))

    dw = dw_ref[...].astype(f32)                                  # (3, 3, Cin)
    acc = jnp.zeros((TH, W, cin), f32)
    for i in range(3):                                            # depthwise (VPU)
        for j in range(3):
            acc = acc + scr[i:i + TH, j:j + W, :] * dw[i, j]

    a2 = acc.reshape(TH * W, cin).astype(mxu_dtype)               # pointwise (MXU)
    y = jnp.dot(a2, pw_ref[...].astype(mxu_dtype),
                preferred_element_type=f32)
    y = y * sc_ref[...] + bi_ref[...]                             # folded BatchNorm
    if relu_out:
        y = jnp.maximum(y, 0.0)
    o_ref[...] = y.reshape(TH, W, -1).astype(o_ref.dtype)


def _sepconv_bn(x, dw, pw, scale, bias, *, relu_in, relu_out, block_h):
    """Fused [ReLU] -> SeparableConv2d(3x3, s1, p1) -> BN -> [ReLU].  NHWC."""
    N, H, W, Cin = x.shape
    Cout = pw.shape[1]
    TH = _pick_rows(H, block_h)
    n_t = H // TH
    mxu_dtype = jnp.bfloat16 if x.dtype == jnp.bfloat16 else jnp.float32

    kernel = functools.partial(_sepconv_kernel, TH=TH, W=W, n_t=n_t,
                               relu_in=relu_in, relu_out=relu_out,
                               mxu_dtype=mxu_dtype)
    esize = x.dtype.itemsize
    cost = pl.CostEstimate(
        flops=2 * N * H * W * Cin * (9 + Cout),
        transcendentals=0,
        bytes_accessed=int(esize * N * H * W * (Cin + Cout)
                           + 4 * (9 * Cin + Cin * Cout + 2 * Cout)))

    return pl.pallas_call(
        kernel,
        out_shape=jax.ShapeDtypeStruct((N, H, W, Cout), x.dtype),
        grid_spec=pltpu.PrefetchScalarGridSpec(
            num_scalar_prefetch=0,
            grid=(N, n_t),
            in_specs=[
                pl.BlockSpec((None, TH, W, Cin), lambda n, t: (n, t, 0, 0)),
                pl.BlockSpec((None, None, W, Cin),
                             lambda n, t: (n, jnp.maximum(t * TH - 1, 0), 0, 0)),
                pl.BlockSpec((None, None, W, Cin),
                             lambda n, t: (n, jnp.minimum(t * TH + TH, H - 1), 0, 0)),
                pl.BlockSpec((3, 3, Cin), lambda n, t: (0, 0, 0)),
                pl.BlockSpec((Cin, Cout), lambda n, t: (0, 0)),
                pl.BlockSpec((1, Cout), lambda n, t: (0, 0)),
                pl.BlockSpec((1, Cout), lambda n, t: (0, 0)),
            ],
            out_specs=pl.BlockSpec((None, TH, W, Cout), lambda n, t: (n, t, 0, 0)),
            scratch_shapes=[pltpu.VMEM((TH + 2, W + 2, Cin), jnp.float32)],
        ),
        compiler_params=pltpu.CompilerParams(
            dimension_semantics=("parallel", "parallel"),
            vmem_limit_bytes=32 * 1024 * 1024),
        cost_estimate=cost,
    )(x, x, x, dw, pw, scale, bias)


# --------------------------------------------------------------------------- #
# Kernel 3: MaxPool2d(3, 2, 1) + shortcut (1x1 stride-2 conv + BN) + add       #
# --------------------------------------------------------------------------- #
def _pool_shortcut_kernel(h_core, h_top, x_ref, ws_ref, sc_ref, bi_ref,
                          o_ref, scr, *, TO, W, Wo, n_t, mxu_dtype):
    # h_core: (2*TO, W, C)   rows [2*t*TO, 2*t*TO + 2*TO)
    # h_top : (W, C)         row  2*t*TO - 1  (-inf pad row when t == 0)
    # x_ref : (2*TO, W, Cin) same rows of the block input (shortcut branch)
    # scr   : (2*TO+1, W+2, C) f32, -inf padded maxpool input window
    t = pl.program_id(1)
    f32 = jnp.float32
    neg = f32(-3.0e38)
    c = h_core.shape[-1]

    scr[...] = jnp.full(scr.shape, neg, f32)
    scr[1:2 * TO + 1, 1:W + 1, :] = h_core[...].astype(f32)
    scr[0, 1:W + 1, :] = jnp.where(t == 0, neg, h_top[...].astype(f32))

    pooled = jnp.full((TO, Wo, c), neg, f32)                      # MaxPool 3x3 / s2
    for a in range(3):
        for b in range(3):
            tap = scr[pl.ds(a, TO, stride=2), pl.ds(b, Wo, stride=2), :]
            pooled = jnp.maximum(pooled, tap)

    # shortcut: 1x1 conv stride 2 (sample every other row/col once) + folded BN
    xs = x_ref[pl.ds(0, TO, stride=2), pl.ds(0, Wo, stride=2), :]
    cin = xs.shape[-1]
    y = jnp.dot(xs.reshape(TO * Wo, cin).astype(mxu_dtype),
                ws_ref[...].astype(mxu_dtype), preferred_element_type=f32)
    y = y * sc_ref[...] + bi_ref[...]

    out = pooled.reshape(TO * Wo, c) + y                          # residual add
    o_ref[...] = out.reshape(TO, Wo, c).astype(o_ref.dtype)


def _pool_shortcut_add(h, x, ws, scale, bias, *, block_h):
    """MaxPool2d(3,2,1)(h) + BN(Conv1x1_s2(x)).  NHWC."""
    N, H, W, C = h.shape
    Cin = x.shape[-1]
    Ho, Wo = H // 2, W // 2
    TO = _pick_rows(Ho, block_h)
    n_t = Ho // TO
    mxu_dtype = jnp.bfloat16 if x.dtype == jnp.bfloat16 else jnp.float32

    kernel = functools.partial(_pool_shortcut_kernel, TO=TO, W=W, Wo=Wo,
                               n_t=n_t, mxu_dtype=mxu_dtype)
    esize = h.dtype.itemsize
    cost = pl.CostEstimate(
        flops=N * Ho * Wo * (9 * C + 2 * Cin * C + 3 * C),
        transcendentals=0,
        bytes_accessed=int(esize * (N * H * W * (C + Cin) + N * Ho * Wo * C)
                           + 4 * (Cin * C + 2 * C)))

    return pl.pallas_call(
        kernel,
        out_shape=jax.ShapeDtypeStruct((N, Ho, Wo, C), h.dtype),
        grid_spec=pltpu.PrefetchScalarGridSpec(
            num_scalar_prefetch=0,
            grid=(N, n_t),
            in_specs=[
                pl.BlockSpec((None, 2 * TO, W, C), lambda n, t: (n, t, 0, 0)),
                pl.BlockSpec((None, None, W, C),
                             lambda n, t: (n, jnp.maximum(2 * TO * t - 1, 0), 0, 0)),
                pl.BlockSpec((None, 2 * TO, W, Cin), lambda n, t: (n, t, 0, 0)),
                pl.BlockSpec((Cin, C), lambda n, t: (0, 0)),
                pl.BlockSpec((1, C), lambda n, t: (0, 0)),
                pl.BlockSpec((1, C), lambda n, t: (0, 0)),
            ],
            out_specs=pl.BlockSpec((None, TO, Wo, C), lambda n, t: (n, t, 0, 0)),
            scratch_shapes=[pltpu.VMEM((2 * TO + 1, W + 2, C), jnp.float32)],
        ),
        compiler_params=pltpu.CompilerParams(
            dimension_semantics=("parallel", "parallel"),
            vmem_limit_bytes=32 * 1024 * 1024),
        cost_estimate=cost,
    )(h, h, x, ws, scale, bias)


# --------------------------------------------------------------------------- #
# Block wrapper (NCHW in / NCHW out, inference-mode BatchNorm)                  #
# --------------------------------------------------------------------------- #
def exception_block_c_forward(x_nchw, p, *, first_block=False, block_h=8):
    N, Cin, H, W = x_nchw.shape
    # TODO(synk): odd H/W needs masked edge handling in the fused maxpool kernel.
    assert H % 2 == 0 and W % 2 == 0, "fused maxpool kernel assumes even H, W"

    eps = 1e-5
    def fold_bn(g, b, m, v):     # inference BatchNorm -> per-channel scale / bias
        s = g / jnp.sqrt(v + eps)
        return (s.reshape(1, -1).astype(jnp.float32),
                (b - m * s).reshape(1, -1).astype(jnp.float32))

    s1, b1 = fold_bn(p["bn1_g"], p["bn1_b"], p["bn1_m"], p["bn1_v"])
    s2, b2 = fold_bn(p["bn2_g"], p["bn2_b"], p["bn2_m"], p["bn2_v"])
    ss, sb = fold_bn(p["bns_g"], p["bns_b"], p["bns_m"], p["bns_v"])

    dw1 = jnp.transpose(p["dw1"][:, 0], (1, 2, 0))        # (3, 3, Cin)
    pw1 = jnp.transpose(p["pw1"][:, :, 0, 0], (1, 0))     # (Cin, Cin)
    dw2 = jnp.transpose(p["dw2"][:, 0], (1, 2, 0))        # (3, 3, Cin)
    pw2 = jnp.transpose(p["pw2"][:, :, 0, 0], (1, 0))     # (Cin, Cout)
    ws = jnp.transpose(p["ws"][:, :, 0, 0], (1, 0))       # (Cin, Cout)

    # single NCHW -> NHWC conversion for the whole block (channels on lanes)
    x = jnp.transpose(x_nchw, (0, 2, 3, 1))

    # main path: [ReLU] -> SepConv -> BN1 -> ReLU -> SepConv -> BN2 -> MaxPool
    h = _sepconv_bn(x, dw1, pw1, s1, b1,
                    relu_in=not first_block, relu_out=True, block_h=block_h)
    h = _sepconv_bn(h, dw2, pw2, s2, b2,
                    relu_in=False, relu_out=False, block_h=block_h)
    out = _pool_shortcut_add(h, x, ws, ss, sb, block_h=max(1, block_h // 2))

    return jnp.transpose(out, (0, 3, 1, 2))               # back to NCHW


# --------------------------------------------------------------------------- #
# Pure-JAX reference (matches PyTorch semantics)                                #
# --------------------------------------------------------------------------- #
def _reference_block(x, p):
    eps = 1e-5

    def bn(y, g, b, m, v):
        s = g / jnp.sqrt(v + eps)
        return y * s[None, :, None, None] + (b - m * s)[None, :, None, None]

    def conv(y, w, stride, pad, groups=1):
        dn = jax.lax.conv_dimension_numbers(y.shape, w.shape, ("NCHW", "OIHW", "NCHW"))
        return jax.lax.conv_general_dilated(
            y, w, (stride, stride), ((pad, pad), (pad, pad)),
            dimension_numbers=dn, feature_group_count=groups)

    # shortcut
    res = conv(x, p["ws"], 2, 0)
    res = bn(res, p["bns_g"], p["bns_b"], p["bns_m"], p["bns_v"])
    # main path
    h = jnp.maximum(x, 0.0)
    h = conv(h, p["dw1"], 1, 1, groups=x.shape[1])
    h = conv(h, p["pw1"], 1, 0)
    h = bn(h, p["bn1_g"], p["bn1_b"], p["bn1_m"], p["bn1_v"])
    h = jnp.maximum(h, 0.0)
    h = conv(h, p["dw2"], 1, 1, groups=x.shape[1])
    h = conv(h, p["pw2"], 1, 0)
    h = bn(h, p["bn2_g"], p["bn2_b"], p["bn2_m"], p["bn2_v"])
    h = jax.lax.reduce_window(h, -jnp.inf, jax.lax.max, (1, 1, 3, 3), (1, 1, 2, 2),
                              ((0, 0), (0, 0), (1, 1), (1, 1)))
    return h + res


if __name__ == "__main__":
    # NOTE: the PyTorch module only runs when in_channels == out_channels
    # (BatchNorm2d(out_channels) is applied to an in_channels tensor).
    N, C_IN, C_OUT, H, W = 2, 8, 8, 16, 16
    key = jax.random.PRNGKey(0)
    ks = jax.random.split(key, 16)

    def nrm(k, shape, s=0.1):
        return s * jax.random.normal(k, shape, jnp.float32)

    x = jax.random.normal(ks[0], (N, C_IN, H, W), jnp.float32)
    p = {
        "dw1": nrm(ks[1], (C_IN, 1, 3, 3), 0.3),
        "pw1": nrm(ks[2], (C_IN, C_IN, 1, 1), 0.3),
        "bn1_g": 1.0 + nrm(ks[3], (C_IN,)),
        "bn1_b": nrm(ks[4], (C_IN,)),
        "bn1_m": nrm(ks[5], (C_IN,)),
        "bn1_v": 1.0 + jnp.abs(nrm(ks[6], (C_IN,))),
        "dw2": nrm(ks[7], (C_IN, 1, 3, 3), 0.3),
        "pw2": nrm(ks[8], (C_OUT, C_IN, 1, 1), 0.3),
        "bn2_g": 1.0 + nrm(ks[9], (C_OUT,)),
        "bn2_b": nrm(ks[10], (C_OUT,)),
        "bn2_m": nrm(ks[11], (C_OUT,)),
        "bn2_v": 1.0 + jnp.abs(nrm(ks[12], (C_OUT,))),
        "ws": nrm(ks[13], (C_OUT, C_IN, 1, 1), 0.3),
        "bns_g": 1.0 + nrm(ks[14], (C_OUT,)),
        "bns_b": nrm(ks[15], (C_OUT,)),
        "bns_m": jnp.zeros((C_OUT,), jnp.float32),
        "bns_v": jnp.ones((C_OUT,), jnp.float32),
    }

    out = exception_block_c_forward(x, p, block_h=8)   # 2 row-tiles per kernel at H=16
    out = jax.block_until_ready(out)

    ref = _reference_block(x, p)
    assert out.shape == ref.shape, (out.shape, ref.shape)
    err = float(jnp.max(jnp.abs(out - ref)))
    assert err < 2e-4, f"max abs err {err}"
    print("KERNEL_OK")
</pallas_src>

<mosaic_0001>
module attributes {stable_mosaic.version = 11 : i64} {
  func.func @_sepconv_kernel(%arg0: i32, %arg1: i32, %arg2: memref<1x8x16x8xf32, #tpu.memory_space<vmem>>, %arg3: memref<1x1x16x8xf32, #tpu.memory_space<vmem>>, %arg4: memref<1x1x16x8xf32, #tpu.memory_space<vmem>>, %arg5: memref<3x3x8xf32, #tpu.memory_space<vmem>>, %arg6: memref<8x8xf32, #tpu.memory_space<vmem>>, %arg7: memref<1x8xf32, #tpu.memory_space<vmem>>, %arg8: memref<1x8xf32, #tpu.memory_space<vmem>>, %arg9: memref<1x8x16x8xf32, #tpu.memory_space<vmem>>, %arg10: memref<10x18x8xf32, #tpu.memory_space<vmem>>) attributes {dimension_semantics = [#tpu.dimension_semantics<parallel>, #tpu.dimension_semantics<parallel>], iteration_bounds = array<i64: 2, 2>, scalar_prefetch = 0 : i64, scratch_operands = 1 : i64, tpu.core_type = #tpu.core_type<tc>, window_params = [{transform_indices = @transform_0, window_bounds = array<i64: 1, 8, 16, 8>}, {transform_indices = @transform_1, window_bounds = array<i64: 1, 1, 16, 8>}, {transform_indices = @transform_2, window_bounds = array<i64: 1, 1, 16, 8>}, {pipeline_mode = #tpu.pipeline_mode<synchronous>, transform_indices = @transform_3, window_bounds = array<i64: 3, 3, 8>}, {pipeline_mode = #tpu.pipeline_mode<synchronous>, transform_indices = @transform_4, window_bounds = array<i64: 8, 8>}, {pipeline_mode = #tpu.pipeline_mode<synchronous>, transform_indices = @transform_5, window_bounds = array<i64: 1, 8>}, {pipeline_mode = #tpu.pipeline_mode<synchronous>, transform_indices = @transform_6, window_bounds = array<i64: 1, 8>}, {transform_indices = @transform_7, window_bounds = array<i64: 1, 8, 16, 8>}]} {
    %cst = arith.constant 0.000000e+00 : f32
    %0 = vector.broadcast %cst : f32 to vector<10x18x8xf32>
    %c0 = arith.constant 0 : index
    %c0_0 = arith.constant 0 : index
    %c0_1 = arith.constant 0 : index
    %1 = vector.load %arg10[%c0, %c0_0, %c0_1] : memref<10x18x8xf32, #tpu.memory_space<vmem>>, vector<10x18x8xf32>
    tpu.vector_store %arg10[%c0, %c0_0, %c0_1], %0 {strides = array<i32>} : memref<10x18x8xf32, #tpu.memory_space<vmem>>, vector<10x18x8xf32>,
    %c0_2 = arith.constant 0 : index
    %c0_3 = arith.constant 0 : index
    %c0_4 = arith.constant 0 : index
    %c0_5 = arith.constant 0 : index
    %2 = vector.load %arg2[%c0_2, %c0_3, %c0_4, %c0_5] : memref<1x8x16x8xf32, #tpu.memory_space<vmem>>, vector<1x8x16x8xf32>
    %3 = vector.shape_cast %2 : vector<1x8x16x8xf32> to vector<8x16x8xf32>
    %cst_6 = arith.constant 0.000000e+00 : f32
    %4 = vector.broadcast %cst_6 : f32 to vector<8x16x8xf32>
    %5 = arith.maximumf %3, %4 : vector<8x16x8xf32>
    %c1 = arith.constant 1 : index
    %c1_7 = arith.constant 1 : index
    %c0_8 = arith.constant 0 : index
    %6 = vector.load %arg10[%c1, %c1_7, %c0_8] : memref<10x18x8xf32, #tpu.memory_space<vmem>>, vector<8x16x8xf32>
    tpu.vector_store %arg10[%c1, %c1_7, %c0_8], %5 {strides = array<i32>} : memref<10x18x8xf32, #tpu.memory_space<vmem>>, vector<8x16x8xf32>,
    %c0_i32 = arith.constant 0 : i32
    %7 = arith.cmpi eq, %arg1, %c0_i32 : i32
    %c0_9 = arith.constant 0 : index
    %c0_10 = arith.constant 0 : index
    %c0_11 = arith.constant 0 : index
    %c0_12 = arith.constant 0 : index
    %8 = vector.load %arg3[%c0_9, %c0_10, %c0_11, %c0_12] : memref<1x1x16x8xf32, #tpu.memory_space<vmem>>, vector<1x1x16x8xf32>
    %9 = vector.shape_cast %8 : vector<1x1x16x8xf32> to vector<16x8xf32>
    %cst_13 = arith.constant 0.000000e+00 : f32
    %10 = vector.broadcast %cst_13 : f32 to vector<16x8xf32>
    %11 = arith.maximumf %9, %10 : vector<16x8xf32>
    %cst_14 = arith.constant 0.000000e+00 : f32
    %12 = vector.broadcast %cst_14 : f32 to vector<16x8xf32>
    %13 = arith.select %7, %12, %11 : vector<16x8xf32>
    %c0_15 = arith.constant 0 : index
    %c1_16 = arith.constant 1 : index
    %c0_17 = arith.constant 0 : index
    %14 = vector.load %arg10[%c0_15, %c1_16, %c0_17] : memref<10x18x8xf32, #tpu.memory_space<vmem>>, vector<1x16x8xf32>
    %15 = vector.shape_cast %14 : vector<1x16x8xf32> to vector<16x8xf32>
    %16 = vector.shape_cast %13 : vector<16x8xf32> to vector<1x16x8xf32>
    tpu.vector_store %arg10[%c0_15, %c1_16, %c0_17], %16 {strides = array<i32>} : memref<10x18x8xf32, #tpu.memory_space<vmem>>, vector<1x16x8xf32>,
    %c1_i32 = arith.constant 1 : i32
    %17 = arith.cmpi eq, %arg1, %c1_i32 : i32
    %c0_18 = arith.constant 0 : index
    %c0_19 = arith.constant 0 : index
    %c0_20 = arith.constant 0 : index
    %c0_21 = arith.constant 0 : index
    %18 = vector.load %arg4[%c0_18, %c0_19, %c0_20, %c0_21] : memref<1x1x16x8xf32, #tpu.memory_space<vmem>>, vector<1x1x16x8xf32>
    %19 = vector.shape_cast %18 : vector<1x1x16x8xf32> to vector<16x8xf32>
    %cst_22 = arith.constant 0.000000e+00 : f32
    %20 = vector.broadcast %cst_22 : f32 to vector<16x8xf32>
    %21 = arith.maximumf %19, %20 : vector<16x8xf32>
    %cst_23 = arith.constant 0.000000e+00 : f32
    %22 = vector.broadcast %cst_23 : f32 to vector<16x8xf32>
    %23 = arith.select %17, %22, %21 : vector<16x8xf32>
    %c9 = arith.constant 9 : index
    %c1_24 = arith.constant 1 : index
    %c0_25 = arith.constant 0 : index
    %24 = vector.load %arg10[%c9, %c1_24, %c0_25] : memref<10x18x8xf32, #tpu.memory_space<vmem>>, vector<1x16x8xf32>
    %25 = vector.shape_cast %24 : vector<1x16x8xf32> to vector<16x8xf32>
    %26 = vector.shape_cast %23 : vector<16x8xf32> to vector<1x16x8xf32>
    tpu.vector_store %arg10[%c9, %c1_24, %c0_25], %26 {strides = array<i32>} : memref<10x18x8xf32, #tpu.memory_space<vmem>>, vector<1x16x8xf32>,
    %c0_26 = arith.constant 0 : index
    %c0_27 = arith.constant 0 : index
    %c0_28 = arith.constant 0 : index
    %27 = vector.load %arg5[%c0_26, %c0_27, %c0_28] : memref<3x3x8xf32, #tpu.memory_space<vmem>>, vector<3x3x8xf32>
    %cst_29 = arith.constant 0.000000e+00 : f32
    %28 = vector.broadcast %cst_29 : f32 to vector<8x16x8xf32>
    %c0_30 = arith.constant 0 : index
    %c0_31 = arith.constant 0 : index
    %c0_32 = arith.constant 0 : index
    %29 = vector.load %arg10[%c0_30, %c0_31, %c0_32] : memref<10x18x8xf32, #tpu.memory_space<vmem>>, vector<8x16x8xf32>
    %30 = vector.extract_strided_slice %27 {offsets = [0, 0, 0], sizes = [1, 1, 8], strides = [1, 1, 1]} : vector<3x3x8xf32> to vector<1x1x8xf32>
    %31 = vector.shape_cast %30 : vector<1x1x8xf32> to vector<8xf32>
    %32 = vector.shape_cast %31 : vector<8xf32> to vector<1x1x8xf32>
    %33 = vector.broadcast %32 : vector<1x1x8xf32> to vector<8x16x8xf32>
    %34 = arith.mulf %29, %33 : vector<8x16x8xf32>
    %35 = arith.addf %28, %34 : vector<8x16x8xf32>
    %c0_33 = arith.constant 0 : index
    %c1_34 = arith.constant 1 : index
    %c0_35 = arith.constant 0 : index
    %36 = vector.load %arg10[%c0_33, %c1_34, %c0_35] : memref<10x18x8xf32, #tpu.memory_space<vmem>>, vector<8x16x8xf32>
    %37 = vector.extract_strided_slice %27 {offsets = [0, 1, 0], sizes = [1, 1, 8], strides = [1, 1, 1]} : vector<3x3x8xf32> to vector<1x1x8xf32>
    %38 = vector.shape_cast %37 : vector<1x1x8xf32> to vector<8xf32>
    %39 = vector.shape_cast %38 : vector<8xf32> to vector<1x1x8xf32>
    %40 = vector.broadcast %39 : vector<1x1x8xf32> to vector<8x16x8xf32>
    %41 = arith.mulf %36, %40 : vector<8x16x8xf32>
    %42 = arith.addf %35, %41 : vector<8x16x8xf32>
    %c0_36 = arith.constant 0 : index
    %c2 = arith.constant 2 : index
    %c0_37 = arith.constant 0 : index
    %43 = vector.load %arg10[%c0_36, %c2, %c0_37] : memref<10x18x8xf32, #tpu.memory_space<vmem>>, vector<8x16x8xf32>
    %44 = vector.extract_strided_slice %27 {offsets = [0, 2, 0], sizes = [1, 1, 8], strides = [1, 1, 1]} : vector<3x3x8xf32> to vector<1x1x8xf32>
    %45 = vector.shape_cast %44 : vector<1x1x8xf32> to vector<8xf32>
    %46 = vector.shape_cast %45 : vector<8xf32> to vector<1x1x8xf32>
    %47 = vector.broadcast %46 : vector<1x1x8xf32> to vector<8x16x8xf32>
    %48 = arith.mulf %43, %47 : vector<8x16x8xf32>
    %49 = arith.addf %42, %48 : vector<8x16x8xf32>
    %c1_38 = arith.constant 1 : index
    %c0_39 = arith.constant 0 : index
    %c0_40 = arith.constant 0 : index
    %50 = vector.load %arg10[%c1_38, %c0_39, %c0_40] : memref<10x18x8xf32, #tpu.memory_space<vmem>>, vector<8x16x8xf32>
    %51 = vector.extract_strided_slice %27 {offsets = [1, 0, 0], sizes = [1, 1, 8], strides = [1, 1, 1]} : vector<3x3x8xf32> to vector<1x1x8xf32>
    %52 = vector.shape_cast %51 : vector<1x1x8xf32> to vector<8xf32>
    %53 = vector.shape_cast %52 : vector<8xf32> to vector<1x1x8xf32>
    %54 = vector.broadcast %53 : vector<1x1x8xf32> to vector<8x16x8xf32>
    %55 = arith.mulf %50, %54 : vector<8x16x8xf32>
    %56 = arith.addf %49, %55 : vector<8x16x8xf32>
    %c1_41 = arith.constant 1 : index
    %c1_42 = arith.constant 1 : index
    %c0_43 = arith.constant 0 : index
    %57 = vector.load %arg10[%c1_41, %c1_42, %c0_43] : memref<10x18x8xf32, #tpu.memory_space<vmem>>, vector<8x16x8xf32>
    %58 = vector.extract_strided_slice %27 {offsets = [1, 1, 0], sizes = [1, 1, 8], strides = [1, 1, 1]} : vector<3x3x8xf32> to vector<1x1x8xf32>
    %59 = vector.shape_cast %58 : vector<1x1x8xf32> to vector<8xf32>
    %60 = vector.shape_cast %59 : vector<8xf32> to vector<1x1x8xf32>
    %61 = vector.broadcast %60 : vector<1x1x8xf32> to vector<8x16x8xf32>
    %62 = arith.mulf %57, %61 : vector<8x16x8xf32>
    %63 = arith.addf %56, %62 : vector<8x16x8xf32>
    %c1_44 = arith.constant 1 : index
    %c2_45 = arith.constant 2 : index
    %c0_46 = arith.constant 0 : index
    %64 = vector.load %arg10[%c1_44, %c2_45, %c0_46] : memref<10x18x8xf32, #tpu.memory_space<vmem>>, vector<8x16x8xf32>
    %65 = vector.extract_strided_slice %27 {offsets = [1, 2, 0], sizes = [1, 1, 8], strides = [1, 1, 1]} : vector<3x3x8xf32> to vector<1x1x8xf32>
    %66 = vector.shape_cast %65 : vector<1x1x8xf32> to vector<8xf32>
    %67 = vector.shape_cast %66 : vector<8xf32> to vector<1x1x8xf32>
    %68 = vector.broadcast %67 : vector<1x1x8xf32> to vector<8x16x8xf32>
    %69 = arith.mulf %64, %68 : vector<8x16x8xf32>
    %70 = arith.addf %63, %69 : vector<8x16x8xf32>
    %c2_47 = arith.constant 2 : index
    %c0_48 = arith.constant 0 : index
    %c0_49 = arith.constant 0 : index
    %71 = vector.load %arg10[%c2_47, %c0_48, %c0_49] : memref<10x18x8xf32, #tpu.memory_space<vmem>>, vector<8x16x8xf32>
    %72 = vector.extract_strided_slice %27 {offsets = [2, 0, 0], sizes = [1, 1, 8], strides = [1, 1, 1]} : vector<3x3x8xf32> to vector<1x1x8xf32>
    %73 = vector.shape_cast %72 : vector<1x1x8xf32> to vector<8xf32>
    %74 = vector.shape_cast %73 : vector<8xf32> to vector<1x1x8xf32>
    %75 = vector.broadcast %74 : vector<1x1x8xf32> to vector<8x16x8xf32>
    %76 = arith.mulf %71, %75 : vector<8x16x8xf32>
    %77 = arith.addf %70, %76 : vector<8x16x8xf32>
    %c2_50 = arith.constant 2 : index
    %c1_51 = arith.constant 1 : index
    %c0_52 = arith.constant 0 : index
    %78 = vector.load %arg10[%c2_50, %c1_51, %c0_52] : memref<10x18x8xf32, #tpu.memory_space<vmem>>, vector<8x16x8xf32>
    %79 = vector.extract_strided_slice %27 {offsets = [2, 1, 0], sizes = [1, 1, 8], strides = [1, 1, 1]} : vector<3x3x8xf32> to vector<1x1x8xf32>
    %80 = vector.shape_cast %79 : vector<1x1x8xf32> to vector<8xf32>
    %81 = vector.shape_cast %80 : vector<8xf32> to vector<1x1x8xf32>
    %82 = vector.broadcast %81 : vector<1x1x8xf32> to vector<8x16x8xf32>
    %83 = arith.mulf %78, %82 : vector<8x16x8xf32>
    %84 = arith.addf %77, %83 : vector<8x16x8xf32>
    %c2_53 = arith.constant 2 : index
    %c2_54 = arith.constant 2 : index
    %c0_55 = arith.constant 0 : index
    %85 = vector.load %arg10[%c2_53, %c2_54, %c0_55] : memref<10x18x8xf32, #tpu.memory_space<vmem>>, vector<8x16x8xf32>
    %86 = vector.extract_strided_slice %27 {offsets = [2, 2, 0], sizes = [1, 1, 8], strides = [1, 1, 1]} : vector<3x3x8xf32> to vector<1x1x8xf32>
    %87 = vector.shape_cast %86 : vector<1x1x8xf32> to vector<8xf32>
    %88 = vector.shape_cast %87 : vector<8xf32> to vector<1x1x8xf32>
    %89 = vector.broadcast %88 : vector<1x1x8xf32> to vector<8x16x8xf32>
    %90 = arith.mulf %85, %89 : vector<8x16x8xf32>
    %91 = arith.addf %84, %90 : vector<8x16x8xf32>
    %92 = vector.shape_cast %91 : vector<8x16x8xf32> to vector<128x8xf32>
    %c0_56 = arith.constant 0 : index
    %c0_57 = arith.constant 0 : index
    %93 = vector.load %arg6[%c0_56, %c0_57] : memref<8x8xf32, #tpu.memory_space<vmem>>, vector<8x8xf32>
    %cst_58 = arith.constant dense<0.000000e+00> : vector<128x8xf32>
    %94 = tpu.matmul %92, %93, %cst_58 {dimension_numbers = #tpu.dot_dimension_numbers<[1], [0], [0], [1], [0, 0, 1, 1], [], []>} : vector<128x8xf32>, vector<8x8xf32>, vector<128x8xf32> -> vector<128x8xf32>
    %c0_59 = arith.constant 0 : index
    %c0_60 = arith.constant 0 : index
    %95 = vector.load %arg7[%c0_59, %c0_60] : memref<1x8xf32, #tpu.memory_space<vmem>>, vector<1x8xf32>
    %96 = vector.broadcast %95 : vector<1x8xf32> to vector<128x8xf32>
    %97 = arith.mulf %94, %96 : vector<128x8xf32>
    %c0_61 = arith.constant 0 : index
    %c0_62 = arith.constant 0 : index
    %98 = vector.load %arg8[%c0_61, %c0_62] : memref<1x8xf32, #tpu.memory_space<vmem>>, vector<1x8xf32>
    %99 = vector.broadcast %98 : vector<1x8xf32> to vector<128x8xf32>
    %100 = arith.addf %97, %99 : vector<128x8xf32>
    %cst_63 = arith.constant 0.000000e+00 : f32
    %101 = vector.broadcast %cst_63 : f32 to vector<128x8xf32>
    %102 = arith.maximumf %100, %101 : vector<128x8xf32>
    %103 = vector.shape_cast %102 : vector<128x8xf32> to vector<8x16x8xf32>
    %c0_64 = arith.constant 0 : index
    %c0_65 = arith.constant 0 : index
    %c0_66 = arith.constant 0 : index
    %c0_67 = arith.constant 0 : index
    %104 = vector.load %arg9[%c0_64, %c0_65, %c0_66, %c0_67] : memref<1x8x16x8xf32, #tpu.memory_space<vmem>>, vector<1x8x16x8xf32>
    %105 = vector.shape_cast %104 : vector<1x8x16x8xf32> to vector<8x16x8xf32>
    %106 = vector.shape_cast %103 : vector<8x16x8xf32> to vector<1x8x16x8xf32>
    tpu.vector_store %arg9[%c0_64, %c0_65, %c0_66, %c0_67], %106 {strides = array<i32>} : memref<1x8x16x8xf32, #tpu.memory_space<vmem>>, vector<1x8x16x8xf32>,
    return
  }
  func.func @transform_0(%arg0: i32, %arg1: i32) -> (i32, i32, i32, i32) {
    %c0_i32 = arith.constant 0 : i32
    %c0_i32_0 = arith.constant 0 : i32
    %c0_i32_1 = arith.constant 0 : i32
    return %arg0, %arg1, %c0_i32, %c0_i32_0 : i32, i32, i32, i32
  }
  func.func @transform_1(%arg0: i32, %arg1: i32) -> (i32, i32, i32, i32) {
    %c8_i32 = arith.constant 8 : i32
    %0 = arith.muli %arg1, %c8_i32 : i32
    %c1_i32 = arith.constant 1 : i32
    %1 = arith.subi %0, %c1_i32 : i32
    %c0_i32 = arith.constant 0 : i32
    %2 = arith.maxsi %1, %c0_i32 : i32
    %c0_i32_0 = arith.constant 0 : i32
    %c0_i32_1 = arith.constant 0 : i32
    %c0_i32_2 = arith.constant 0 : i32
    return %arg0, %2, %c0_i32_0, %c0_i32_1 : i32, i32, i32, i32
  }
  func.func @transform_2(%arg0: i32, %arg1: i32) -> (i32, i32, i32, i32) {
    %c8_i32 = arith.constant 8 : i32
    %0 = arith.muli %arg1, %c8_i32 : i32
    %c8_i32_0 = arith.constant 8 : i32
    %1 = arith.addi %0, %c8_i32_0 : i32
    %c15_i32 = arith.constant 15 : i32
    %2 = arith.minsi %1, %c15_i32 : i32
    %c0_i32 = arith.constant 0 : i32
    %c0_i32_1 = arith.constant 0 : i32
    %c0_i32_2 = arith.constant 0 : i32
    return %arg0, %2, %c0_i32, %c0_i32_1 : i32, i32, i32, i32
  }
  func.func @transform_3(%arg0: i32, %arg1: i32) -> (i32, i32, i32) {
    %c0_i32 = arith.constant 0 : i32
    %c0_i32_0 = arith.constant 0 : i32
    %c0_i32_1 = arith.constant 0 : i32
    %c0_i32_2 = arith.constant 0 : i32
    return %c0_i32, %c0_i32_0, %c0_i32_1 : i32, i32, i32
  }
  func.func @transform_4(%arg0: i32, %arg1: i32) -> (i32, i32) {
    %c0_i32 = arith.constant 0 : i32
    %c0_i32_0 = arith.constant 0 : i32
    %c0_i32_1 = arith.constant 0 : i32
    return %c0_i32, %c0_i32_0 : i32, i32
  }
  func.func @transform_5(%arg0: i32, %arg1: i32) -> (i32, i32) {
    %c0_i32 = arith.constant 0 : i32
    %c0_i32_0 = arith.constant 0 : i32
    %c0_i32_1 = arith.constant 0 : i32
    return %c0_i32, %c0_i32_0 : i32, i32
  }
  func.func @transform_6(%arg0: i32, %arg1: i32) -> (i32, i32) {
    %c0_i32 = arith.constant 0 : i32
    %c0_i32_0 = arith.constant 0 : i32
    %c0_i32_1 = arith.constant 0 : i32
    return %c0_i32, %c0_i32_0 : i32, i32
  }
  func.func @transform_7(%arg0: i32, %arg1: i32) -> (i32, i32, i32, i32) {
    %c0_i32 = arith.constant 0 : i32
    %c0_i32_0 = arith.constant 0 : i32
    %c0_i32_1 = arith.constant 0 : i32
    return %arg0, %arg1, %c0_i32, %c0_i32_0 : i32, i32, i32, i32
  }
}

</mosaic_0001>

<llo_original>
// kernel: tpu_custom_call.1
$region0: #{tpu_custom_call.1}
  #allocation0 [shape = 'u32[]', space=smem, size = 0x4, offset = 0x4, fixed_abs, tag = 'smem constant byte address 0x4 - core index']
  #allocation1 [shape = 'u32[72,128]{1,0:T(1,128)}', space=vmem, size = 0x9000, scoped, tag = 'internal scratch']
  #allocation2 [shape = 'f32[10,18,8]{2,1,0:T(8,128)}', space=vmem, size = 0x1e000, scoped, tag = 'scratch operand']
  %s0 = inlined_call_operand.vmem [shape: f32[2,16,16,8], index: 0, kind: input, shape index: {}]
  %s1 = inlined_call_operand.vmem [shape: f32[2,16,16,8], index: 1, kind: input, shape index: {}]
  %s2 = inlined_call_operand.vmem [shape: f32[2,16,16,8], index: 2, kind: input, shape index: {}]
  %s3 = inlined_call_operand.vmem [shape: f32[3,3,8], index: 3, kind: input, shape index: {}]
  %s4 = inlined_call_operand.vmem [shape: f32[8,8], index: 4, kind: input, shape index: {}]
  %s5 = inlined_call_operand.vmem [shape: f32[1,8], index: 5, kind: input, shape index: {}]
  %s6 = inlined_call_operand.vmem [shape: f32[1,8], index: 6, kind: input, shape index: {}]
  %s7 = inlined_call_operand.vmem [shape: f32[2,16,16,8], index: 7, kind: output, shape index: {}]
  %s8 = sld [smem:[#allocation0]]
  $region61: #{tpu_custom_call.1} parent=0
    _
  %s10 = ssub.s32 1, %s8
  %s11 = scalar_select 0, %s10, %s8
  loop: start=0, step=1, limit=6
  $region2: #{tpu_custom_call.1} parent=0 // loop_pre_header
    _
  $region3: #{tpu_custom_call.1} parent=0 // loop_header
    %s13 = sphi 0, %s17
    %p14 = scmp.ge.s32.totalorder %s13, 6
    %s20 = sphi 0, %s32
    %s21 = sphi 0, %s28
    %s22 = sphi 0, %s20
    %s23 = sphi 0, %s21
    %s24 = sphi 0, %s22
    %s25 = sphi 0, %s23
    %s37 = sphi 0, %s39
    %s40 = sphi 0, %s37
    %s41 = sphi 0, %s40
    %s57 = sphi 0, %s41
    %s73 = sphi 0, %s75
    %s76 = sphi 0, %s73
    %s77 = sphi 0, %s76
    %s93 = sphi 0, %s77
    %s109 = sphi 0, %s111
    %s112 = sphi 0, %s109
    %s113 = sphi 0, %s112
    %s129 = sphi 0, %s113
    %s133 = sphi 0, %s133
    %s135 = sphi 0, %s133
    %s136 = sphi 0, %s135
    %s150 = sphi 0, %s136
    %s154 = sphi 0, %s154
    %s156 = sphi 0, %s154
    %s157 = sphi 0, %s156
    %s171 = sphi 0, %s157
    %s175 = sphi 0, %s175
    %s177 = sphi 0, %s175
    %s178 = sphi 0, %s177
    %s192 = sphi 0, %s178
    %s196 = sphi 0, %s196
    %s198 = sphi 0, %s196
    %s199 = sphi 0, %s198
    %s213 = sphi 0, %s199
    %s221 = sphi 0, %s223
    %s224 = sphi 0, %s221
    %s225 = sphi 0, %s224
    %s241 = sphi 0, %s225
  $region4: #{tpu_custom_call.1} parent=0 // loop_header_branch
    %16 = sbr.rel (%p14) target = $region8
  $region5: #{tpu_custom_call.1} parent=0 // loop_body
    %s18 = ssub.s32 %s13, 1
    %s19 = ssub.s32 %s13, 2
    %s26 = sadd.s32 1, %s21
    %p27 = scmp.ge.s32.totalorder %s26, 2
    %s28 = scalar_select %p27, 0, %s26
    %s29 = sadd.s32 1, %s20
    %s30 = scalar_select %p27, %s29, %s20
    %p31 = scmp.ge.s32.totalorder %s30, 2
    %s32 = scalar_select %p31, 0, %s30
    %s33 = ssub.s32 %s20, %s32
    %s34 = ssub.s32 %s21, %s28
    %s35 = sor.u32 %s33, %s34
    %p36 = scmp.eq.s32.totalorder %s35, 0
    %s38 = sadd.s32 %s37, 1
    %s39 = scalar_select %p36, %s37, %s38
    %p42 = pneg %p36
    %p43 = scmp.eq.s32.totalorder %s13, 3
    %p44 = por %p42, %p43
    %p45 = scmp.ne.s32.totalorder %s37, %s40
    %p46 = scmp.eq.s32.totalorder %s13, 0
    %p47 = por %p45, %p46
    %p48 = scmp.ne.s32.totalorder %s37, %s40
    %p49 = scmp.eq.s32.totalorder %s18, 3
    %p50 = por %p48, %p49
    %p51 = scmp.ne.s32.totalorder %s40, %s41
    %p52 = scmp.eq.s32.totalorder %s18, 0
    %p53 = por %p51, %p52
    %p54 = scmp.ne.s32.totalorder %s40, %s41
    %p55 = scmp.eq.s32.totalorder %s19, 3
    %p56 = por %p54, %p55
    %p58 = scmp.ne.s32.totalorder %s41, %s57
    %p59 = scmp.eq.s32.totalorder %s19, 0
    %p60 = por %p58, %p59
    %s61 = smul.u32 %s21, 8
    %s62 = ssub.s32 %s61, 1
    %p63 = scmp.gt.s32.totalorder %s62, 0
    %s64 = scalar_select %p63, %s62, 0
    %s65 = smul.u32 %s28, 8
    %s66 = ssub.s32 %s65, 1
    %p67 = scmp.gt.s32.totalorder %s66, 0
    %s68 = scalar_select %p67, %s66, 0
    %s69 = ssub.s32 %s20, %s32
    %s70 = ssub.s32 %s64, %s68
    %s71 = sor.u32 %s69, %s70
    %p72 = scmp.eq.s32.totalorder %s71, 0
    %s74 = sadd.s32 %s73, 1
    %s75 = scalar_select %p72, %s73, %s74
    %p78 = pneg %p72
    %p79 = scmp.eq.s32.totalorder %s13, 3
    %p80 = por %p78, %p79
    %p81 = scmp.ne.s32.totalorder %s73, %s76
    %p82 = scmp.eq.s32.totalorder %s13, 0
    %p83 = por %p81, %p82
    %p84 = scmp.ne.s32.totalorder %s73, %s76
    %p85 = scmp.eq.s32.totalorder %s18, 3
    %p86 = por %p84, %p85
    %p87 = scmp.ne.s32.totalorder %s76, %s77
    %p88 = scmp.eq.s32.totalorder %s18, 0
    %p89 = por %p87, %p88
    %p90 = scmp.ne.s32.totalorder %s76, %s77
    %p91 = scmp.eq.s32.totalorder %s19, 3
    %p92 = por %p90, %p91
    %p94 = scmp.ne.s32.totalorder %s77, %s93
    %p95 = scmp.eq.s32.totalorder %s19, 0
    %p96 = por %p94, %p95
    %s97 = smul.u32 %s21, 8
    %s98 = sadd.s32 %s97, 8
    %p99 = scmp.lt.s32.totalorder %s98, 15
    %s100 = scalar_select %p99, %s98, 15
    %s101 = smul.u32 %s28, 8
    %s102 = sadd.s32 %s101, 8
    %p103 = scmp.lt.s32.totalorder %s102, 15
    %s104 = scalar_select %p103, %s102, 15
    %s105 = ssub.s32 %s20, %s32
    %s106 = ssub.s32 %s100, %s104
    %s107 = sor.u32 %s105, %s106
    %p108 = scmp.eq.s32.totalorder %s107, 0
    %s110 = sadd.s32 %s109, 1
    %s111 = scalar_select %p108, %s109, %s110
    %p114 = pneg %p108
    %p115 = scmp.eq.s32.totalorder %s13, 3
    %p116 = por %p114, %p115
    %p117 = scmp.ne.s32.totalorder %s109, %s112
    %p118 = scmp.eq.s32.totalorder %s13, 0
    %p119 = por %p117, %p118
    %p120 = scmp.ne.s32.totalorder %s109, %s112
    %p121 = scmp.eq.s32.totalorder %s18, 3
    %p122 = por %p120, %p121
    %p123 = scmp.ne.s32.totalorder %s112, %s113
    %p124 = scmp.eq.s32.totalorder %s18, 0
    %p125 = por %p123, %p124
    %p126 = scmp.ne.s32.totalorder %s112, %s113
    %p127 = scmp.eq.s32.totalorder %s19, 3
    %p128 = por %p126, %p127
    %p130 = scmp.ne.s32.totalorder %s113, %s129
    %p131 = scmp.eq.s32.totalorder %s19, 0
    %p132 = por %p130, %p131
    %s134 = sadd.s32 %s133, 1
    %p137 = scmp.eq.s32.totalorder %s13, 3
    %p138 = scmp.ne.s32.totalorder %s133, %s135
    %p139 = scmp.eq.s32.totalorder %s13, 0
    %p140 = por %p138, %p139
    %p141 = scmp.ne.s32.totalorder %s133, %s135
    %p142 = scmp.eq.s32.totalorder %s18, 3
    %p143 = por %p141, %p142
    %p144 = scmp.ne.s32.totalorder %s135, %s136
    %p145 = scmp.eq.s32.totalorder %s18, 0
    %p146 = por %p144, %p145
    %p147 = scmp.ne.s32.totalorder %s135, %s136
    %p148 = scmp.eq.s32.totalorder %s19, 3
    %p149 = por %p147, %p148
    %p151 = scmp.ne.s32.totalorder %s136, %s150
    %p152 = scmp.eq.s32.totalorder %s19, 0
    %p153 = por %p151, %p152
    %s155 = sadd.s32 %s154, 1
    %p158 = scmp.eq.s32.totalorder %s13, 3
    %p159 = scmp.ne.s32.totalorder %s154, %s156
    %p160 = scmp.eq.s32.totalorder %s13, 0
    %p161 = por %p159, %p160
    %p162 = scmp.ne.s32.totalorder %s154, %s156
    %p163 = scmp.eq.s32.totalorder %s18, 3
    %p164 = por %p162, %p163
    %p165 = scmp.ne.s32.totalorder %s156, %s157
    %p166 = scmp.eq.s32.totalorder %s18, 0
    %p167 = por %p165, %p166
    %p168 = scmp.ne.s32.totalorder %s156, %s157
    %p169 = scmp.eq.s32.totalorder %s19, 3
    %p170 = por %p168, %p169
    %p172 = scmp.ne.s32.totalorder %s157, %s171
    %p173 = scmp.eq.s32.totalorder %s19, 0
    %p174 = por %p172, %p173
    %s176 = sadd.s32 %s175, 1
    %p179 = scmp.eq.s32.totalorder %s13, 3
    %p180 = scmp.ne.s32.totalorder %s175, %s177
    %p181 = scmp.eq.s32.totalorder %s13, 0
    %p182 = por %p180, %p181
    %p183 = scmp.ne.s32.totalorder %s175, %s177
    %p184 = scmp.eq.s32.totalorder %s18, 3
    %p185 = por %p183, %p184
    %p186 = scmp.ne.s32.totalorder %s177, %s178
    %p187 = scmp.eq.s32.totalorder %s18, 0
    %p188 = por %p186, %p187
    %p189 = scmp.ne.s32.totalorder %s177, %s178
    %p190 = scmp.eq.s32.totalorder %s19, 3
    %p191 = por %p189, %p190
    %p193 = scmp.ne.s32.totalorder %s178, %s192
    %p194 = scmp.eq.s32.totalorder %s19, 0
    %p195 = por %p193, %p194
    %s197 = sadd.s32 %s196, 1
    %p200 = scmp.eq.s32.totalorder %s13, 3
    %p201 = scmp.ne.s32.totalorder %s196, %s198
    %p202 = scmp.eq.s32.totalorder %s13, 0
    %p203 = por %p201, %p202
    %p204 = scmp.ne.s32.totalorder %s196, %s198
    %p205 = scmp.eq.s32.totalorder %s18, 3
    %p206 = por %p204, %p205
    %p207 = scmp.ne.s32.totalorder %s198, %s199
    %p208 = scmp.eq.s32.totalorder %s18, 0
    %p209 = por %p207, %p208
    %p210 = scmp.ne.s32.totalorder %s198, %s199
    %p211 = scmp.eq.s32.totalorder %s19, 3
    %p212 = por %p210, %p211
    %p214 = scmp.ne.s32.totalorder %s199, %s213
    %p215 = scmp.eq.s32.totalorder %s19, 0
    %p216 = por %p214, %p215
    %s217 = ssub.s32 %s20, %s32
    %s218 = ssub.s32 %s21, %s28
    %s219 = sor.u32 %s217, %s218
    %p220 = scmp.eq.s32.totalorder %s219, 0
    %s222 = sadd.s32 %s221, 1
    %s223 = scalar_select %p220, %s221, %s222
    %p226 = pneg %p220
    %p227 = scmp.eq.s32.totalorder %s13, 3
    %p228 = por %p226, %p227
    %p229 = scmp.ne.s32.totalorder %s221, %s224
    %p230 = scmp.eq.s32.totalorder %s13, 0
    %p231 = por %p229, %p230
    %p232 = scmp.ne.s32.totalorder %s221, %s224
    %p233 = scmp.eq.s32.totalorder %s18, 3
    %p234 = por %p232, %p233
    %p235 = scmp.ne.s32.totalorder %s224, %s225
    %p236 = scmp.eq.s32.totalorder %s18, 0
    %p237 = por %p235, %p236
    %p238 = scmp.ne.s32.totalorder %s224, %s225
    %p239 = scmp.eq.s32.totalorder %s19, 3
    %p240 = por %p238, %p239
    %p242 = scmp.ne.s32.totalorder %s225, %s241
    %p243 = scmp.eq.s32.totalorder %s19, 0
    %p244 = por %p242, %p243
    %p245 = scmp.le.s32.totalorder 1, %s13
    %p246 = scmp.lt.s32.totalorder %s13, 5
    %p247 = pnand %p245, %p246
    %p248 = pneg %p247
    // Predicated region
    $region9: #{tpu_custom_call.1} parent=5 // pred_check
      _
    $region10: #{tpu_custom_call.1} parent=5 // pred_check_branch
      %250 = sbr.rel (%p247) target = $region12
    $region11: #{tpu_custom_call.1} parent=5 // pred_region
      %s251 = ssub.s32 %s13, 1
      // Predicated region
      $region13: #{tpu_custom_call.1} parent=11 // pred_check
        %p252 = pneg %p146
      $region14: #{tpu_custom_call.1} parent=11 // pred_check_branch
        %254 = sbr.rel (%p252) target = $region16
      $region15: #{tpu_custom_call.1} parent=11 // pred_region
        _
      $region16: #{tpu_custom_call.1} parent=11 // pred_fallthru
        _
      // Predicated region
      $region17: #{tpu_custom_call.1} parent=11 // pred_check
        %p255 = pneg %p167
      $region18: #{tpu_custom_call.1} parent=11 // pred_check_branch
        %257 = sbr.rel (%p255) target = $region20
      $region19: #{tpu_custom_call.1} parent=11 // pred_region
        _
      $region20: #{tpu_custom_call.1} parent=11 // pred_fallthru
        _
      // Predicated region
      $region21: #{tpu_custom_call.1} parent=11 // pred_check
        %p258 = pneg %p188
      $region22: #{tpu_custom_call.1} parent=11 // pred_check_branch
        %260 = sbr.rel (%p258) target = $region24
      $region23: #{tpu_custom_call.1} parent=11 // pred_region
        _
      $region24: #{tpu_custom_call.1} parent=11 // pred_fallthru
        _
      // Predicated region
      $region25: #{tpu_custom_call.1} parent=11 // pred_check
        %p261 = pneg %p209
      $region26: #{tpu_custom_call.1} parent=11 // pred_check_branch
        %263 = sbr.rel (%p261) target = $region28
      $region27: #{tpu_custom_call.1} parent=11 // pred_region
        _
      $region28: #{tpu_custom_call.1} parent=11 // pred_fallthru
        _
    $region12: #{tpu_custom_call.1} parent=5 // pred_fallthru
      _
    %p264 = scmp.lt.s32.totalorder %s13, 4
    // Predicated region
    $region29: #{tpu_custom_call.1} parent=5 // pred_check
      %p265 = pneg %p264
    $region30: #{tpu_custom_call.1} parent=5 // pred_check_branch
      %267 = sbr.rel (%p265) target = $region32
    $region31: #{tpu_custom_call.1} parent=5 // pred_region
      // Predicated region
      $region33: #{tpu_custom_call.1} parent=31 // pred_check
        %p268 = pneg %p47
      $region34: #{tpu_custom_call.1} parent=31 // pred_check_branch
        %270 = sbr.rel (%p268) target = $region36
      $region35: #{tpu_custom_call.1} parent=31 // pred_region
        %s271 = smul.u32 8, %s21
        %p272 = scmp.lt.s32.totalorder %s20, 1
        %s273 = scalar_select %p272, %s20, 1
        %p274 = scmp.lt.s32.totalorder %s271, 15
        %s275 = scalar_select %p274, %s271, 15
        %s276 = smul.addr %s275, 2
        %s277 = smul.addr %s273, 32
        %s278 = sadd.s32 %s276, %s277
        %s279 = smul.addr %s278, 8
        %s280 = scalar_lea.vmem %s0, %s279
        %s281 = smul.u32 8, %s21
      $region36: #{tpu_custom_call.1} parent=31 // pred_fallthru
        _
      // Predicated region
      $region37: #{tpu_custom_call.1} parent=31 // pred_check
        %p282 = pneg %p83
      $region38: #{tpu_custom_call.1} parent=31 // pred_check_branch
        %284 = sbr.rel (%p282) target = $region40
      $region39: #{tpu_custom_call.1} parent=31 // pred_region
        %s285 = smul.u32 %s21, 8
        %s286 = ssub.s32 %s285, 1
        %p287 = scmp.gt.s32.totalorder %s286, 0
        %s288 = scalar_select %p287, %s286, 0
        %p289 = scmp.lt.s32.totalorder %s20, 1
        %s290 = scalar_select %p289, %s20, 1
        %p291 = scmp.lt.s32.totalorder %s288, 15
        %s292 = scalar_select %p291, %s288, 15
        %s293 = smul.addr %s292, 2
        %s294 = smul.addr %s290, 32
        %s295 = sadd.s32 %s293, %s294
        %s296 = smul.addr %s295, 8
        %s297 = scalar_lea.vmem %s1, %s296
        %s298 = smul.u32 %s21, 8
        %s299 = ssub.s32 %s298, 1
        %p300 = scmp.gt.s32.totalorder %s299, 0
        %s301 = scalar_select %p300, %s299, 0
      $region40: #{tpu_custom_call.1} parent=31 // pred_fallthru
        _
      // Predicated region
      $region41: #{tpu_custom_call.1} parent=31 // pred_check
        %p302 = pneg %p119
      $region42: #{tpu_custom_call.1} parent=31 // pred_check_branch
        %304 = sbr.rel (%p302) target = $region44
      $region43: #{tpu_custom_call.1} parent=31 // pred_region
        %s305 = smul.u32 %s21, 8
        %s306 = sadd.s32 %s305, 8
        %p307 = scmp.lt.s32.totalorder %s306, 15
        %s308 = scalar_select %p307, %s306, 15
        %p309 = scmp.lt.s32.totalorder %s20, 1
        %s310 = scalar_select %p309, %s20, 1
        %p311 = scmp.lt.s32.totalorder %s308, 15
        %s312 = scalar_select %p311, %s308, 15
        %s313 = smul.addr %s312, 2
        %s314 = smul.addr %s310, 32
        %s315 = sadd.s32 %s313, %s314
        %s316 = smul.addr %s315, 8
        %s317 = scalar_lea.vmem %s2, %s316
        %s318 = smul.u32 %s21, 8
        %s319 = sadd.s32 %s318, 8
        %p320 = scmp.lt.s32.totalorder %s319, 15
        %s321 = scalar_select %p320, %s319, 15
      $region44: #{tpu_custom_call.1} parent=31 // pred_fallthru
        _
    $region32: #{tpu_custom_call.1} parent=5 // pred_fallthru
      _
    %p322 = scmp.le.s32.totalorder 1, %s13
    %p323 = scmp.lt.s32.totalorder %s13, 5
    %p324 = pnand %p322, %p323
    %p325 = pneg %p324
    // Predicated region
    $region45: #{tpu_custom_call.1} parent=5 // pred_check
      _
    $region46: #{tpu_custom_call.1} parent=5 // pred_check_branch
      %327 = sbr.rel (%p324) target = $region48
    $region47: #{tpu_custom_call.1} parent=5 // pred_region
      %s328 = ssub.s32 %s13, 1
      %s329 = smul.u32 8, %s23
      %p330 = scmp.lt.s32.totalorder %s22, 1
      %s331 = scalar_select %p330, %s22, 1
      %p332 = scmp.lt.s32.totalorder %s329, 15
      %s333 = scalar_select %p332, %s329, 15
      %s334 = smul.addr %s333, 2
      %s335 = smul.addr %s331, 32
      %s336 = sadd.s32 %s334, %s335
      %s337 = smul.addr %s336, 8
      %s338 = scalar_lea.vmem %s0, %s337
      %p339 = pneg %p53
      %p340 = pneg %p50
      %s341 = smul.u32 %s23, 8
      %s342 = ssub.s32 %s341, 1
      %p343 = scmp.gt.s32.totalorder %s342, 0
      %s344 = scalar_select %p343, %s342, 0
      %p345 = scmp.lt.s32.totalorder %s22, 1
      %s346 = scalar_select %p345, %s22, 1
      %p347 = scmp.lt.s32.totalorder %s344, 15
      %s348 = scalar_select %p347, %s344, 15
      %s349 = smul.addr %s348, 2
      %s350 = smul.addr %s346, 32
      %s351 = sadd.s32 %s349, %s350
      %s352 = smul.addr %s351, 8
      %s353 = scalar_lea.vmem %s1, %s352
      %p354 = pneg %p89
      %p355 = pneg %p86
      %s356 = smul.u32 %s23, 8
      %s357 = sadd.s32 %s356, 8
      %p358 = scmp.lt.s32.totalorder %s357, 15
      %s359 = scalar_select %p358, %s357, 15
      %p360 = scmp.lt.s32.totalorder %s22, 1
      %s361 = scalar_select %p360, %s22, 1
      %p362 = scmp.lt.s32.totalorder %s359, 15
      %s363 = scalar_select %p362, %s359, 15
      %s364 = smul.addr %s363, 2
      %s365 = smul.addr %s361, 32
      %s366 = sadd.s32 %s364, %s365
      %s367 = smul.addr %s366, 8
      %s368 = scalar_lea.vmem %s2, %s367
      %p369 = pneg %p125
      %p370 = pneg %p122
      %p371 = pneg %p146
      %p372 = pneg %p143
      %p373 = pneg %p167
      %p374 = pneg %p164
      %p375 = pneg %p188
      %p376 = pneg %p185
      %p377 = pneg %p209
      %p378 = pneg %p206
      %p379 = pneg %p237
      %p380 = pneg %p234
      %s381 = smul.u32 8, %s23
      %p382 = scmp.lt.s32.totalorder %s22, 1
      %s383 = scalar_select %p382, %s22, 1
      %p384 = scmp.lt.s32.totalorder %s381, 15
      %s385 = scalar_select %p384, %s381, 15
      %s386 = smul.addr %s385, 2
      %s387 = smul.addr %s383, 32
      %s388 = sadd.s32 %s386, %s387
      %s389 = smul.addr %s388, 8
      %s390 = scalar_lea.vmem %s7, %s389
      %s391 = smul.u32 8, %s23
      %p392 = scmp.lt.s32.totalorder %s22, 1
      %s393 = scalar_select %p392, %s22, 1
      %p394 = scmp.lt.s32.totalorder %s391, 15
      %s395 = scalar_select %p394, %s391, 15
      %s396 = smul.addr %s395, 2
      %s397 = smul.addr %s393, 32
      %s398 = sadd.s32 %s396, %s397
      %s399 = smul.addr %s398, 8
      %s400 = scalar_lea.vmem %s0, %s399
      %s401 = smul.u32 8, %s23
      %s402 = smul.u32 %s23, 8
      %s403 = ssub.s32 %s402, 1
      %p404 = scmp.gt.s32.totalorder %s403, 0
      %s405 = scalar_select %p404, %s403, 0
      %p406 = scmp.lt.s32.totalorder %s22, 1
      %s407 = scalar_select %p406, %s22, 1
      %p408 = scmp.lt.s32.totalorder %s405, 15
      %s409 = scalar_select %p408, %s405, 15
      %s410 = smul.addr %s409, 2
      %s411 = smul.addr %s407, 32
      %s412 = sadd.s32 %s410, %s411
      %s413 = smul.addr %s412, 8
      %s414 = scalar_lea.vmem %s1, %s413
      %s415 = smul.u32 %s23, 8
      %s416 = ssub.s32 %s415, 1
      %p417 = scmp.gt.s32.totalorder %s416, 0
      %s418 = scalar_select %p417, %s416, 0
      %s419 = smul.u32 %s23, 8
      %s420 = sadd.s32 %s419, 8
      %p421 = scmp.lt.s32.totalorder %s420, 15
      %s422 = scalar_select %p421, %s420, 15
      %p423 = scmp.lt.s32.totalorder %s22, 1
      %s424 = scalar_select %p423, %s22, 1
      %p425 = scmp.lt.s32.totalorder %s422, 15
      %s426 = scalar_select %p425, %s422, 15
      %s427 = smul.addr %s426, 2
      %s428 = smul.addr %s424, 32
      %s429 = sadd.s32 %s427, %s428
      %s430 = smul.addr %s429, 8
      %s431 = scalar_lea.vmem %s2, %s430
      %s432 = smul.u32 %s23, 8
      %s433 = sadd.s32 %s432, 8
      %p434 = scmp.lt.s32.totalorder %s433, 15
      %s435 = scalar_select %p434, %s433, 15
      %s436 = smul.u32 8, %s23
      %p437 = scmp.lt.s32.totalorder %s22, 1
      %s438 = scalar_select %p437, %s22, 1
      %p439 = scmp.lt.s32.totalorder %s436, 15
      %s440 = scalar_select %p439, %s436, 15
      %s441 = smul.addr %s440, 2
      %s442 = smul.addr %s438, 32
      %s443 = sadd.s32 %s441, %s442
      %s444 = smul.addr %s443, 8
      %s445 = scalar_lea.vmem %s7, %s444
      %s446 = smul.u32 8, %s23
      %vm447 = vcmask 64512
      %448 = vst.msk [vmem:[#allocation2] sm:$0xff] %vm447, 0.0
      %449 = vst.msk [vmem:[#allocation2 + $0x8] sm:$0xff] %vm447, 0.0
      %vm450 = vcmask 58368
      %451 = vst.msk [vmem:[#allocation2 + $0x10] sm:$0x3] %vm450, 0.0
      %452 = vst.msk [vmem:[#allocation2 + $0x18] sm:$0xff] %vm447, 0.0
      %453 = vst.msk [vmem:[#allocation2 + $0x20] sm:$0xff] %vm447, 0.0
      %454 = vst.msk [vmem:[#allocation2 + $0x28] sm:$0x3] %vm450, 0.0
      %455 = vst.msk [vmem:[#allocation2 + $0x30] sm:$0xff] %vm447, 0.0
      %456 = vst.msk [vmem:[#allocation2 + $0x38] sm:$0xff] %vm447, 0.0
      %457 = vst.msk [vmem:[#allocation2 + $0x40] sm:$0x3] %vm450, 0.0
      %458 = vst.msk [vmem:[#allocation2 + $0x48] sm:$0xff] %vm447, 0.0
      %459 = vst.msk [vmem:[#allocation2 + $0x50] sm:$0xff] %vm447, 0.0
      %460 = vst.msk [vmem:[#allocation2 + $0x58] sm:$0x3] %vm450, 0.0
      %461 = vst.msk [vmem:[#allocation2 + $0x60] sm:$0xff] %vm447, 0.0
      %462 = vst.msk [vmem:[#allocation2 + $0x68] sm:$0xff] %vm447, 0.0
      %463 = vst.msk [vmem:[#allocation2 + $0x70] sm:$0x3] %vm450, 0.0
      %464 = vst.msk [vmem:[#allocation2 + $0x78] sm:$0xff] %vm447, 0.0
      %465 = vst.msk [vmem:[#allocation2 + $0x80] sm:$0xff] %vm447, 0.0
      %466 = vst.msk [vmem:[#allocation2 + $0x88] sm:$0x3] %vm450, 0.0
      %467 = vst.msk [vmem:[#allocation2 + $0x90] sm:$0xff] %vm447, 0.0
      %468 = vst.msk [vmem:[#allocation2 + $0x98] sm:$0xff] %vm447, 0.0
      %469 = vst.msk [vmem:[#allocation2 + $0xa0] sm:$0x3] %vm450, 0.0
      %470 = vst.msk [vmem:[#allocation2 + $0xa8] sm:$0xff] %vm447, 0.0
      %471 = vst.msk [vmem:[#allocation2 + $0xb0] sm:$0xff] %vm447, 0.0
      %472 = vst.msk [vmem:[#allocation2 + $0xb8] sm:$0x3] %vm450, 0.0
      %473 = vst.msk [vmem:[#allocation2 + $0xc0] sm:$0xff] %vm447, 0.0
      %474 = vst.msk [vmem:[#allocation2 + $0xc8] sm:$0xff] %vm447, 0.0
      %475 = vst.msk [vmem:[#allocation2 + $0xd0] sm:$0x3] %vm450, 0.0
      %476 = vst.msk [vmem:[#allocation2 + $0xd8] sm:$0xff] %vm447, 0.0
      %477 = vst.msk [vmem:[#allocation2 + $0xe0] sm:$0xff] %vm447, 0.0
      %478 = vst.msk [vmem:[#allocation2 + $0xe8] sm:$0x3] %vm450, 0.0
      %v479 = vld [vmem:[%s400] sm:$0xff]
      %v480 = vld [vmem:[%s400 + $0x8] sm:$0xff]
      %v481 = vld [vmem:[%s400 + $0x10] sm:$0xff]
      %v482 = vld [vmem:[%s400 + $0x18] sm:$0xff]
      %v483 = vld [vmem:[%s400 + $0x20] sm:$0xff]
      %v484 = vld [vmem:[%s400 + $0x28] sm:$0xff]
      %v485 = vld [vmem:[%s400 + $0x30] sm:$0xff]
      %v486 = vld [vmem:[%s400 + $0x38] sm:$0xff]
      %v487 = vld [vmem:[%s400 + $0x40] sm:$0xff]
      %v488 = vld [vmem:[%s400 + $0x48] sm:$0xff]
      %v489 = vld [vmem:[%s400 + $0x50] sm:$0xff]
      %v490 = vld [vmem:[%s400 + $0x58] sm:$0xff]
      %v491 = vld [vmem:[%s400 + $0x60] sm:$0xff]
      %v492 = vld [vmem:[%s400 + $0x68] sm:$0xff]
      %v493 = vld [vmem:[%s400 + $0x70] sm:$0xff]
      %v494 = vld [vmem:[%s400 + $0x78] sm:$0xff]
      %v495 = vmax.f32 %v479, 0.0
      %v496 = vmax.f32 %v480, 0.0
      %v497 = vmax.f32 %v481, 0.0
      %v498 = vmax.f32 %v482, 0.0
      %v499 = vmax.f32 %v483, 0.0
      %v500 = vmax.f32 %v484, 0.0
      %v501 = vmax.f32 %v485, 0.0
      %v502 = vmax.f32 %v486, 0.0
      %v503 = vmax.f32 %v487, 0.0
      %v504 = vmax.f32 %v488, 0.0
      %v505 = vmax.f32 %v489, 0.0
      %v506 = vmax.f32 %v490, 0.0
      %v507 = vmax.f32 %v491, 0.0
      %v508 = vmax.f32 %v492, 0.0
      %v509 = vmax.f32 %v493, 0.0
      %v510 = vmax.f32 %v494, 0.0
      %s511 = scalar_lea.vmem [#allocation2], 24
      %512 = vst.msk [vmem:[%s511 + $0x1] sm:$0xff] %vm447, %v495
      %513 = vst.msk [vmem:[%s511 + $0x9] sm:$0xff] %vm447, %v496
      %514 = vst.msk [vmem:[%s511 + $0x19] sm:$0xff] %vm447, %v497
      %515 = vst.msk [vmem:[%s511 + $0x21] sm:$0xff] %vm447, %v498
      %516 = vst.msk [vmem:[%s511 + $0x31] sm:$0xff] %vm447, %v499
      %517 = vst.msk [vmem:[%s511 + $0x39] sm:$0xff] %vm447, %v500
      %518 = vst.msk [vmem:[%s511 + $0x49] sm:$0xff] %vm447, %v501
      %519 = vst.msk [vmem:[%s511 + $0x51] sm:$0xff] %vm447, %v502
      %520 = vst.msk [vmem:[%s511 + $0x61] sm:$0xff] %vm447, %v503
      %521 = vst.msk [vmem:[%s511 + $0x69] sm:$0xff] %vm447, %v504
      %522 = vst.msk [vmem:[%s511 + $0x79] sm:$0xff] %vm447, %v505
      %523 = vst.msk [vmem:[%s511 + $0x81] sm:$0xff] %vm447, %v506
      %524 = vst.msk [vmem:[%s511 + $0x91] sm:$0xff] %vm447, %v507
      %525 = vst.msk [vmem:[%s511 + $0x99] sm:$0xff] %vm447, %v508
      %526 = vst.msk [vmem:[%s511 + $0xa9] sm:$0xff] %vm447, %v509
      %527 = vst.msk [vmem:[%s511 + $0xb1] sm:$0xff] %vm447, %v510
      %p528 = scmp.eq.s32.totalorder %s23, 0
      %v529 = vld [vmem:[%s414] sm:$0xff]
      %v530 = vld [vmem:[%s414 + $0x8] sm:$0xff]
      %v531 = vmax.f32 %v529, 0.0
      %v532 = vmax.f32 %v530, 0.0
      %s533 = scalar_select %p528, 1, 0
      %v534 = vstv %s533
      %vm535 = vcmp.eq.s32.totalorder %v534, 1
      %v536 = vsel %vm535, 0.0, %v531
      %v537 = vsel %vm535, 0.0, %v532
      %538 = vst.msk [vmem:[#allocation2 + $0x1] sm:$0xff] %vm447, %v536
      %539 = vst.msk [vmem:[#allocation2 + $0x9] sm:$0xff] %vm447, %v537
      %p540 = scmp.eq.s32.totalorder %s23, 1
      %v541 = vld [vmem:[%s431] sm:$0xff]
      %v542 = vld [vmem:[%s431 + $0x8] sm:$0xff]
      %v543 = vmax.f32 %v541, 0.0
      %v544 = vmax.f32 %v542, 0.0
      %s545 = scalar_select %p540, 1, 0
      %v546 = vstv %s545
      %vm547 = vcmp.eq.s32.totalorder %v546, 1
      %v548 = vsel %vm547, 0.0, %v543
      %v549 = vsel %vm547, 0.0, %v544
      %s550 = scalar_lea.vmem [#allocation2], 216
      %551 = vst.msk [vmem:[%s550 + $0x1] sm:$0xff] %vm447, %v548
      %552 = vst.msk [vmem:[%s550 + $0x9] sm:$0xff] %vm447, %v549
      %v553 = vld [vmem:[%s3] sm:$0x7]
      %v554 = vld [vmem:[%s3 + $0x4] sm:$0x7]
      %v555 = vld [vmem:[%s3 + $0x8] sm:$0x7]
      %v556 = vld [vmem:[#allocation2] sm:$0xff]
      %v557 = vld [vmem:[#allocation2 + $0x8] sm:$0xff]
      %v558 = vld [vmem:[#allocation2 + $0x18] sm:$0xff]
      %v559 = vld [vmem:[#allocation2 + $0x20] sm:$0xff]
      %v560 = vld [vmem:[#allocation2 + $0x30] sm:$0xff]
      %v561 = vld [vmem:[#allocation2 + $0x38] sm:$0xff]
      %v562 = vld [vmem:[#allocation2 + $0x48] sm:$0xff]
      %v563 = vld [vmem:[#allocation2 + $0x50] sm:$0xff]
      %v564 = vld [vmem:[#allocation2 + $0x60] sm:$0xff]
      %v565 = vld [vmem:[#allocation2 + $0x68] sm:$0xff]
      %v566 = vld [vmem:[#allocation2 + $0x78] sm:$0xff]
      %v567 = vld [vmem:[#allocation2 + $0x80] sm:$0xff]
      %v568 = vld [vmem:[#allocation2 + $0x90] sm:$0xff]
      %v569 = vld [vmem:[#allocation2 + $0x98] sm:$0xff]
      %v570 = vld [vmem:[#allocation2 + $0xa8] sm:$0xff]
      %v571 = vld [vmem:[#allocation2 + $0xb0] sm:$0xff]
      %v572 = vperm.slane %v553, 0
      %v573 = vmul.f32 %v556, %v572
      %v574 = vmul.f32 %v557, %v572
      %v575 = vmul.f32 %v558, %v572
      %v576 = vmul.f32 %v559, %v572
      %v577 = vmul.f32 %v560, %v572
      %v578 = vmul.f32 %v561, %v572
      %v579 = vmul.f32 %v562, %v572
      %v580 = vmul.f32 %v563, %v572
      %v581 = vmul.f32 %v564, %v572
      %v582 = vmul.f32 %v565, %v572
      %v583 = vmul.f32 %v566, %v572
      %v584 = vmul.f32 %v567, %v572
      %v585 = vmul.f32 %v568, %v572
      %v586 = vmul.f32 %v569, %v572
      %v587 = vmul.f32 %v570, %v572
      %v588 = vmul.f32 %v571, %v572
      %v589 = vadd.f32 %v573, 0.0
      %v590 = vadd.f32 %v574, 0.0
      %v591 = vadd.f32 %v575, 0.0
      %v592 = vadd.f32 %v576, 0.0
      %v593 = vadd.f32 %v577, 0.0
      %v594 = vadd.f32 %v578, 0.0
      %v595 = vadd.f32 %v579, 0.0
      %v596 = vadd.f32 %v580, 0.0
      %v597 = vadd.f32 %v581, 0.0
      %v598 = vadd.f32 %v582, 0.0
      %v599 = vadd.f32 %v583, 0.0
      %v600 = vadd.f32 %v584, 0.0
      %v601 = vadd.f32 %v585, 0.0
      %v602 = vadd.f32 %v586, 0.0
      %v603 = vadd.f32 %v587, 0.0
      %v604 = vadd.f32 %v588, 0.0
      %v605 = vld [vmem:[#allocation2 + $0x1] sm:$0xff]
      %v606 = vld [vmem:[#allocation2 + $0x9] sm:$0xff]
      %v607 = vld [vmem:[#allocation2 + $0x19] sm:$0xff]
      %v608 = vld [vmem:[#allocation2 + $0x21] sm:$0xff]
      %v609 = vld [vmem:[#allocation2 + $0x31] sm:$0xff]
      %v610 = vld [vmem:[#allocation2 + $0x39] sm:$0xff]
      %v611 = vld [vmem:[#allocation2 + $0x49] sm:$0xff]
      %v612 = vld [vmem:[#allocation2 + $0x51] sm:$0xff]
      %v613 = vld [vmem:[#allocation2 + $0x61] sm:$0xff]
      %v614 = vld [vmem:[#allocation2 + $0x69] sm:$0xff]
      %v615 = vld [vmem:[#allocation2 + $0x79] sm:$0xff]
      %v616 = vld [vmem:[#allocation2 + $0x81] sm:$0xff]
      %v617 = vld [vmem:[#allocation2 + $0x91] sm:$0xff]
      %v618 = vld [vmem:[#allocation2 + $0x99] sm:$0xff]
      %v619 = vld [vmem:[#allocation2 + $0xa9] sm:$0xff]
      %v620 = vld [vmem:[#allocation2 + $0xb1] sm:$0xff]
      %v621 = vperm.slane %v553, 1
      %v622 = vmul.f32 %v605, %v621
      %v623 = vmul.f32 %v606, %v621
      %v624 = vmul.f32 %v607, %v621
      %v625 = vmul.f32 %v608, %v621
      %v626 = vmul.f32 %v609, %v621
      %v627 = vmul.f32 %v610, %v621
      %v628 = vmul.f32 %v611, %v621
      %v629 = vmul.f32 %v612, %v621
      %v630 = vmul.f32 %v613, %v621
      %v631 = vmul.f32 %v614, %v621
      %v632 = vmul.f32 %v615, %v621
      %v633 = vmul.f32 %v616, %v621
      %v634 = vmul.f32 %v617, %v621
      %v635 = vmul.f32 %v618, %v621
      %v636 = vmul.f32 %v619, %v621
      %v637 = vmul.f32 %v620, %v621
      %v638 = vadd.f32 %v589, %v622
      %v639 = vadd.f32 %v590, %v623
      %v640 = vadd.f32 %v591, %v624
      %v641 = vadd.f32 %v592, %v625
      %v642 = vadd.f32 %v593, %v626
      %v643 = vadd.f32 %v594, %v627
      %v644 = vadd.f32 %v595, %v628
      %v645 = vadd.f32 %v596, %v629
      %v646 = vadd.f32 %v597, %v630
      %v647 = vadd.f32 %v598, %v631
      %v648 = vadd.f32 %v599, %v632
      %v649 = vadd.f32 %v600, %v633
      %v650 = vadd.f32 %v601, %v634
      %v651 = vadd.f32 %v602, %v635
      %v652 = vadd.f32 %v603, %v636
      %v653 = vadd.f32 %v604, %v637
      %v654 = vld [vmem:[#allocation2 + $0x2] sm:$0xff]
      %v655 = vld [vmem:[#allocation2 + $0xa] sm:$0xff]
      %v656 = vld [vmem:[#allocation2 + $0x1a] sm:$0xff]
      %v657 = vld [vmem:[#allocation2 + $0x22] sm:$0xff]
      %v658 = vld [vmem:[#allocation2 + $0x32] sm:$0xff]
      %v659 = vld [vmem:[#allocation2 + $0x3a] sm:$0xff]
      %v660 = vld [vmem:[#allocation2 + $0x4a] sm:$0xff]
      %v661 = vld [vmem:[#allocation2 + $0x52] sm:$0xff]
      %v662 = vld [vmem:[#allocation2 + $0x62] sm:$0xff]
      %v663 = vld [vmem:[#allocation2 + $0x6a] sm:$0xff]
      %v664 = vld [vmem:[#allocation2 + $0x7a] sm:$0xff]
      %v665 = vld [vmem:[#allocation2 + $0x82] sm:$0xff]
      %v666 = vld [vmem:[#allocation2 + $0x92] sm:$0xff]
      %v667 = vld [vmem:[#allocation2 + $0x9a] sm:$0xff]
      %v668 = vld [vmem:[#allocation2 + $0xaa] sm:$0xff]
      %v669 = vld [vmem:[#allocation2 + $0xb2] sm:$0xff]
      %v670 = vperm.slane %v553, 2
      %v671 = vmul.f32 %v654, %v670
      %v672 = vmul.f32 %v655, %v670
      %v673 = vmul.f32 %v656, %v670
      %v674 = vmul.f32 %v657, %v670
      %v675 = vmul.f32 %v658, %v670
      %v676 = vmul.f32 %v659, %v670
      %v677 = vmul.f32 %v660, %v670
      %v678 = vmul.f32 %v661, %v670
      %v679 = vmul.f32 %v662, %v670
      %v680 = vmul.f32 %v663, %v670
      %v681 = vmul.f32 %v664, %v670
      %v682 = vmul.f32 %v665, %v670
      %v683 = vmul.f32 %v666, %v670
      %v684 = vmul.f32 %v667, %v670
      %v685 = vmul.f32 %v668, %v670
      %v686 = vmul.f32 %v669, %v670
      %v687 = vadd.f32 %v638, %v671
      %v688 = vadd.f32 %v639, %v672
      %v689 = vadd.f32 %v640, %v673
      %v690 = vadd.f32 %v641, %v674
      %v691 = vadd.f32 %v642, %v675
      %v692 = vadd.f32 %v643, %v676
      %v693 = vadd.f32 %v644, %v677
      %v694 = vadd.f32 %v645, %v678
      %v695 = vadd.f32 %v646, %v679
      %v696 = vadd.f32 %v647, %v680
      %v697 = vadd.f32 %v648, %v681
      %v698 = vadd.f32 %v649, %v682
      %v699 = vadd.f32 %v650, %v683
      %v700 = vadd.f32 %v651, %v684
      %v701 = vadd.f32 %v652, %v685
      %v702 = vadd.f32 %v653, %v686
      %v703 = vld [vmem:[%s511] sm:$0xff]
      %v704 = vld [vmem:[%s511 + $0x8] sm:$0xff]
      %v705 = vld [vmem:[%s511 + $0x18] sm:$0xff]
      %v706 = vld [vmem:[%s511 + $0x20] sm:$0xff]
      %v707 = vld [vmem:[%s511 + $0x30] sm:$0xff]
      %v708 = vld [vmem:[%s511 + $0x38] sm:$0xff]
      %v709 = vld [vmem:[%s511 + $0x48] sm:$0xff]
      %v710 = vld [vmem:[%s511 + $0x50] sm:$0xff]
      %v711 = vld [vmem:[%s511 + $0x60] sm:$0xff]
      %v712 = vld [vmem:[%s511 + $0x68] sm:$0xff]
      %v713 = vld [vmem:[%s511 + $0x78] sm:$0xff]
      %v714 = vld [vmem:[%s511 + $0x80] sm:$0xff]
      %v715 = vld [vmem:[%s511 + $0x90] sm:$0xff]
      %v716 = vld [vmem:[%s511 + $0x98] sm:$0xff]
      %v717 = vld [vmem:[%s511 + $0xa8] sm:$0xff]
      %v718 = vld [vmem:[%s511 + $0xb0] sm:$0xff]
      %v719 = vperm.slane %v554, 0
      %v720 = vmul.f32 %v703, %v719
      %v721 = vmul.f32 %v704, %v719
      %v722 = vmul.f32 %v705, %v719
      %v723 = vmul.f32 %v706, %v719
      %v724 = vmul.f32 %v707, %v719
      %v725 = vmul.f32 %v708, %v719
      %v726 = vmul.f32 %v709, %v719
      %v727 = vmul.f32 %v710, %v719
      %v728 = vmul.f32 %v711, %v719
      %v729 = vmul.f32 %v712, %v719
      %v730 = vmul.f32 %v713, %v719
      %v731 = vmul.f32 %v714, %v719
      %v732 = vmul.f32 %v715, %v719
      %v733 = vmul.f32 %v716, %v719
      %v734 = vmul.f32 %v717, %v719
      %v735 = vmul.f32 %v718, %v719
      %v736 = vadd.f32 %v687, %v720
      %v737 = vadd.f32 %v688, %v721
      %v738 = vadd.f32 %v689, %v722
      %v739 = vadd.f32 %v690, %v723
      %v740 = vadd.f32 %v691, %v724
      %v741 = vadd.f32 %v692, %v725
      %v742 = vadd.f32 %v693, %v726
      %v743 = vadd.f32 %v694, %v727
      %v744 = vadd.f32 %v695, %v728
      %v745 = vadd.f32 %v696, %v729
      %v746 = vadd.f32 %v697, %v730
      %v747 = vadd.f32 %v698, %v731
      %v748 = vadd.f32 %v699, %v732
      %v749 = vadd.f32 %v700, %v733
      %v750 = vadd.f32 %v701, %v734
      %v751 = vadd.f32 %v702, %v735
      %v752 = vld [vmem:[%s511 + $0x1] sm:$0xff]
      %v753 = vld [vmem:[%s511 + $0x9] sm:$0xff]
      %v754 = vld [vmem:[%s511 + $0x19] sm:$0xff]
      %v755 = vld [vmem:[%s511 + $0x21] sm:$0xff]
      %v756 = vld [vmem:[%s511 + $0x31] sm:$0xff]
      %v757 = vld [vmem:[%s511 + $0x39] sm:$0xff]
      %v758 = vld [vmem:[%s511 + $0x49] sm:$0xff]
      %v759 = vld [vmem:[%s511 + $0x51] sm:$0xff]
      %v760 = vld [vmem:[%s511 + $0x61] sm:$0xff]
      %v761 = vld [vmem:[%s511 + $0x69] sm:$0xff]
      %v762 = vld [vmem:[%s511 + $0x79] sm:$0xff]
      %v763 = vld [vmem:[%s511 + $0x81] sm:$0xff]
      %v764 = vld [vmem:[%s511 + $0x91] sm:$0xff]
      %v765 = vld [vmem:[%s511 + $0x99] sm:$0xff]
      %v766 = vld [vmem:[%s511 + $0xa9] sm:$0xff]
      %v767 = vld [vmem:[%s511 + $0xb1] sm:$0xff]
      %v768 = vperm.slane %v554, 1
      %v769 = vmul.f32 %v752, %v768
      %v770 = vmul.f32 %v753, %v768
      %v771 = vmul.f32 %v754, %v768
      %v772 = vmul.f32 %v755, %v768
      %v773 = vmul.f32 %v756, %v768
      %v774 = vmul.f32 %v757, %v768
      %v775 = vmul.f32 %v758, %v768
      %v776 = vmul.f32 %v759, %v768
      %v777 = vmul.f32 %v760, %v768
      %v778 = vmul.f32 %v761, %v768
      %v779 = vmul.f32 %v762, %v768
      %v780 = vmul.f32 %v763, %v768
      %v781 = vmul.f32 %v764, %v768
      %v782 = vmul.f32 %v765, %v768
      %v783 = vmul.f32 %v766, %v768
      %v784 = vmul.f32 %v767, %v768
      %v785 = vadd.f32 %v736, %v769
      %v786 = vadd.f32 %v737, %v770
      %v787 = vadd.f32 %v738, %v771
      %v788 = vadd.f32 %v739, %v772
      %v789 = vadd.f32 %v740, %v773
      %v790 = vadd.f32 %v741, %v774
      %v791 = vadd.f32 %v742, %v775
      %v792 = vadd.f32 %v743, %v776
      %v793 = vadd.f32 %v744, %v777
      %v794 = vadd.f32 %v745, %v778
      %v795 = vadd.f32 %v746, %v779
      %v796 = vadd.f32 %v747, %v780
      %v797 = vadd.f32 %v748, %v781
      %v798 = vadd.f32 %v749, %v782
      %v799 = vadd.f32 %v750, %v783
      %v800 = vadd.f32 %v751, %v784
      %v801 = vld [vmem:[%s511 + $0x2] sm:$0xff]
      %v802 = vld [vmem:[%s511 + $0xa] sm:$0xff]
      %v803 = vld [vmem:[%s511 + $0x1a] sm:$0xff]
      %v804 = vld [vmem:[%s511 + $0x22] sm:$0xff]
      %v805 = vld [vmem:[%s511 + $0x32] sm:$0xff]
      %v806 = vld [vmem:[%s511 + $0x3a] sm:$0xff]
      %v807 = vld [vmem:[%s511 + $0x4a] sm:$0xff]
      %v808 = vld [vmem:[%s511 + $0x52] sm:$0xff]
      %v809 = vld [vmem:[%s511 + $0x62] sm:$0xff]
      %v810 = vld [vmem:[%s511 + $0x6a] sm:$0xff]
      %v811 = vld [vmem:[%s511 + $0x7a] sm:$0xff]
      %v812 = vld [vmem:[%s511 + $0x82] sm:$0xff]
      %v813 = vld [vmem:[%s511 + $0x92] sm:$0xff]
      %v814 = vld [vmem:[%s511 + $0x9a] sm:$0xff]
      %v815 = vld [vmem:[%s511 + $0xaa] sm:$0xff]
      %v816 = vld [vmem:[%s511 + $0xb2] sm:$0xff]
      %v817 = vperm.slane %v554, 2
      %v818 = vmul.f32 %v801, %v817
      %v819 = vmul.f32 %v802, %v817
      %v820 = vmul.f32 %v803, %v817
      %v821 = vmul.f32 %v804, %v817
      %v822 = vmul.f32 %v805, %v817
      %v823 = vmul.f32 %v806, %v817
      %v824 = vmul.f32 %v807, %v817
      %v825 = vmul.f32 %v808, %v817
      %v826 = vmul.f32 %v809, %v817
      %v827 = vmul.f32 %v810, %v817
      %v828 = vmul.f32 %v811, %v817
      %v829 = vmul.f32 %v812, %v817
      %v830 = vmul.f32 %v813, %v817
      %v831 = vmul.f32 %v814, %v817
      %v832 = vmul.f32 %v815, %v817
      %v833 = vmul.f32 %v816, %v817
      %v834 = vadd.f32 %v785, %v818
      %v835 = vadd.f32 %v786, %v819
      %v836 = vadd.f32 %v787, %v820
      %v837 = vadd.f32 %v788, %v821
      %v838 = vadd.f32 %v789, %v822
      %v839 = vadd.f32 %v790, %v823
      %v840 = vadd.f32 %v791, %v824
      %v841 = vadd.f32 %v792, %v825
      %v842 = vadd.f32 %v793, %v826
      %v843 = vadd.f32 %v794, %v827
      %v844 = vadd.f32 %v795, %v828
      %v845 = vadd.f32 %v796, %v829
      %v846 = vadd.f32 %v797, %v830
      %v847 = vadd.f32 %v798, %v831
      %v848 = vadd.f32 %v799, %v832
      %v849 = vadd.f32 %v800, %v833
      %s850 = scalar_lea.vmem [#allocation2], 48
      %v851 = vld [vmem:[%s850] sm:$0xff]
      %v852 = vld [vmem:[%s850 + $0x8] sm:$0xff]
      %v853 = vld [vmem:[%s850 + $0x18] sm:$0xff]
      %v854 = vld [vmem:[%s850 + $0x20] sm:$0xff]
      %v855 = vld [vmem:[%s850 + $0x30] sm:$0xff]
      %v856 = vld [vmem:[%s850 + $0x38] sm:$0xff]
      %v857 = vld [vmem:[%s850 + $0x48] sm:$0xff]
      %v858 = vld [vmem:[%s850 + $0x50] sm:$0xff]
      %v859 = vld [vmem:[%s850 + $0x60] sm:$0xff]
      %v860 = vld [vmem:[%s850 + $0x68] sm:$0xff]
      %v861 = vld [vmem:[%s850 + $0x78] sm:$0xff]
      %v862 = vld [vmem:[%s850 + $0x80] sm:$0xff]
      %v863 = vld [vmem:[%s850 + $0x90] sm:$0xff]
      %v864 = vld [vmem:[%s850 + $0x98] sm:$0xff]
      %v865 = vld [vmem:[%s850 + $0xa8] sm:$0xff]
      %v866 = vld [vmem:[%s850 + $0xb0] sm:$0xff]
      %v867 = vperm.slane %v555, 0
      %v868 = vmul.f32 %v851, %v867
      %v869 = vmul.f32 %v852, %v867
      %v870 = vmul.f32 %v853, %v867
      %v871 = vmul.f32 %v854, %v867
      %v872 = vmul.f32 %v855, %v867
      %v873 = vmul.f32 %v856, %v867
      %v874 = vmul.f32 %v857, %v867
      %v875 = vmul.f32 %v858, %v867
      %v876 = vmul.f32 %v859, %v867
      %v877 = vmul.f32 %v860, %v867
      %v878 = vmul.f32 %v861, %v867
      %v879 = vmul.f32 %v862, %v867
      %v880 = vmul.f32 %v863, %v867
      %v881 = vmul.f32 %v864, %v867
      %v882 = vmul.f32 %v865, %v867
      %v883 = vmul.f32 %v866, %v867
      %v884 = vadd.f32 %v834, %v868
      %v885 = vadd.f32 %v835, %v869
      %v886 = vadd.f32 %v836, %v870
      %v887 = vadd.f32 %v837, %v871
      %v888 = vadd.f32 %v838, %v872
      %v889 = vadd.f32 %v839, %v873
      %v890 = vadd.f32 %v840, %v874
      %v891 = vadd.f32 %v841, %v875
      %v892 = vadd.f32 %v842, %v876
      %v893 = vadd.f32 %v843, %v877
      %v894 = vadd.f32 %v844, %v878
      %v895 = vadd.f32 %v845, %v879
      %v896 = vadd.f32 %v846, %v880
      %v897 = vadd.f32 %v847, %v881
      %v898 = vadd.f32 %v848, %v882
      %v899 = vadd.f32 %v849, %v883
      %v900 = vld [vmem:[%s850 + $0x1] sm:$0xff]
      %v901 = vld [vmem:[%s850 + $0x9] sm:$0xff]
      %v902 = vld [vmem:[%s850 + $0x19] sm:$0xff]
      %v903 = vld [vmem:[%s850 + $0x21] sm:$0xff]
      %v904 = vld [vmem:[%s850 + $0x31] sm:$0xff]
      %v905 = vld [vmem:[%s850 + $0x39] sm:$0xff]
      %v906 = vld [vmem:[%s850 + $0x49] sm:$0xff]
      %v907 = vld [vmem:[%s850 + $0x51] sm:$0xff]
      %v908 = vld [vmem:[%s850 + $0x61] sm:$0xff]
      %v909 = vld [vmem:[%s850 + $0x69] sm:$0xff]
      %v910 = vld [vmem:[%s850 + $0x79] sm:$0xff]
      %v911 = vld [vmem:[%s850 + $0x81] sm:$0xff]
      %v912 = vld [vmem:[%s850 + $0x91] sm:$0xff]
      %v913 = vld [vmem:[%s850 + $0x99] sm:$0xff]
      %v914 = vld [vmem:[%s850 + $0xa9] sm:$0xff]
      %v915 = vld [vmem:[%s850 + $0xb1] sm:$0xff]
      %v916 = vperm.slane %v555, 1
      %v917 = vmul.f32 %v900, %v916
      %v918 = vmul.f32 %v901, %v916
      %v919 = vmul.f32 %v902, %v916
      %v920 = vmul.f32 %v903, %v916
      %v921 = vmul.f32 %v904, %v916
      %v922 = vmul.f32 %v905, %v916
      %v923 = vmul.f32 %v906, %v916
      %v924 = vmul.f32 %v907, %v916
      %v925 = vmul.f32 %v908, %v916
      %v926 = vmul.f32 %v909, %v916
      %v927 = vmul.f32 %v910, %v916
      %v928 = vmul.f32 %v911, %v916
      %v929 = vmul.f32 %v912, %v916
      %v930 = vmul.f32 %v913, %v916
      %v931 = vmul.f32 %v914, %v916
      %v932 = vmul.f32 %v915, %v916
      %v933 = vadd.f32 %v884, %v917
      %v934 = vadd.f32 %v885, %v918
      %v935 = vadd.f32 %v886, %v919
      %v936 = vadd.f32 %v887, %v920
      %v937 = vadd.f32 %v888, %v921
      %v938 = vadd.f32 %v889, %v922
      %v939 = vadd.f32 %v890, %v923
      %v940 = vadd.f32 %v891, %v924
      %v941 = vadd.f32 %v892, %v925
      %v942 = vadd.f32 %v893, %v926
      %v943 = vadd.f32 %v894, %v927
      %v944 = vadd.f32 %v895, %v928
      %v945 = vadd.f32 %v896, %v929
      %v946 = vadd.f32 %v897, %v930
      %v947 = vadd.f32 %v898, %v931
      %v948 = vadd.f32 %v899, %v932
      %v949 = vld [vmem:[%s850 + $0x2] sm:$0xff]
      %v950 = vld [vmem:[%s850 + $0xa] sm:$0xff]
      %v951 = vld [vmem:[%s850 + $0x1a] sm:$0xff]
      %v952 = vld [vmem:[%s850 + $0x22] sm:$0xff]
      %v953 = vld [vmem:[%s850 + $0x32] sm:$0xff]
      %v954 = vld [vmem:[%s850 + $0x3a] sm:$0xff]
      %v955 = vld [vmem:[%s850 + $0x4a] sm:$0xff]
      %v956 = vld [vmem:[%s850 + $0x52] sm:$0xff]
      %v957 = vld [vmem:[%s850 + $0x62] sm:$0xff]
      %v958 = vld [vmem:[%s850 + $0x6a] sm:$0xff]
      %v959 = vld [vmem:[%s850 + $0x7a] sm:$0xff]
      %v960 = vld [vmem:[%s850 + $0x82] sm:$0xff]
      %v961 = vld [vmem:[%s850 + $0x92] sm:$0xff]
      %v962 = vld [vmem:[%s850 + $0x9a] sm:$0xff]
      %v963 = vld [vmem:[%s850 + $0xaa] sm:$0xff]
      %v964 = vld [vmem:[%s850 + $0xb2] sm:$0xff]
      %v965 = vperm.slane %v555, 2
      %v966 = vmul.f32 %v949, %v965
      %v967 = vmul.f32 %v950, %v965
      %v968 = vmul.f32 %v951, %v965
      %v969 = vmul.f32 %v952, %v965
      %v970 = vmul.f32 %v953, %v965
      %v971 = vmul.f32 %v954, %v965
      %v972 = vmul.f32 %v955, %v965
      %v973 = vmul.f32 %v956, %v965
      %v974 = vmul.f32 %v957, %v965
      %v975 = vmul.f32 %v958, %v965
      %v976 = vmul.f32 %v959, %v965
      %v977 = vmul.f32 %v960, %v965
      %v978 = vmul.f32 %v961, %v965
      %v979 = vmul.f32 %v962, %v965
      %v980 = vmul.f32 %v963, %v965
      %v981 = vmul.f32 %v964, %v965
      %v982 = vadd.f32 %v933, %v966
      %v983 = vadd.f32 %v934, %v967
      %v984 = vadd.f32 %v935, %v968
      %v985 = vadd.f32 %v936, %v969
      %v986 = vadd.f32 %v937, %v970
      %v987 = vadd.f32 %v938, %v971
      %v988 = vadd.f32 %v939, %v972
      %v989 = vadd.f32 %v940, %v973
      %v990 = vadd.f32 %v941, %v974
      %v991 = vadd.f32 %v942, %v975
      %v992 = vadd.f32 %v943, %v976
      %v993 = vadd.f32 %v944, %v977
      %v994 = vadd.f32 %v945, %v978
      %v995 = vadd.f32 %v946, %v979
      %v996 = vadd.f32 %v947, %v980
      %v997 = vadd.f32 %v948, %v981
      %v998 = vld [vmem:[%s4] sm:$0xff]
      %v1000 = vsel %vm447, %v982, 0
      %v1003 = vsel %vm447, %v983, 0
      %v1006 = vsel %vm447, %v984, 0
      %v1009 = vsel %vm447, %v985, 0
      %v1012 = vsel %vm447, %v986, 0
      %v1015 = vsel %vm447, %v987, 0
      %v1018 = vsel %vm447, %v988, 0
      %v1021 = vsel %vm447, %v989, 0
      %v1024 = vsel %vm447, %v990, 0
      %v1027 = vsel %vm447, %v991, 0
      %v1030 = vsel %vm447, %v992, 0
      %v1033 = vsel %vm447, %v993, 0
      %v1036 = vsel %vm447, %v994, 0
      %v1039 = vsel %vm447, %v995, 0
      %v1042 = vsel %vm447, %v996, 0
      %v1045 = vsel %vm447, %v997, 0
      %1047 = vmatpush.msra.mxu0 0.0
      %1048 = vmatpush.msra.mxu0 0.0
      %1049 = vmatpush.msra.mxu0 0.0
      %1050 = vmatpush.msra.mxu0 0.0
      %1051 = vmatpush.msra.mxu0 0.0
      %1052 = vmatpush.msra.mxu0 0.0
      %1053 = vmatpush.msra.mxu0 0.0
      %1054 = vmatpush.msra.mxu0 0.0
      %1055 = vmatpush.msra.mxu0 0.0
      %1056 = vmatpush.msra.mxu0 0.0
      %1057 = vmatpush.msra.mxu0 0.0
      %1058 = vmatpush.msra.mxu0 0.0
      %1059 = vmatpush.msra.mxu0 0.0
      %1060 = vmatpush.msra.mxu0 0.0
      %1061 = vmatpush.msra.mxu0 0.0
      %1062 = vmatpush.msra.mxu0 %v998
      %1063 = vmatmul.f32.gmra.mxu0 %v1000
      %v1064 = vpop.f32.mrf.mxu0
      %v1065 = vadd.f32 0.0, %v1064
      %1066 = vmatmul.f32.gmra.mxu0 %v1003
      %v1067 = vpop.f32.mrf.mxu0
      %v1068 = vadd.f32 0.0, %v1067
      %1069 = vmatmul.f32.gmra.mxu0 %v1006
      %v1070 = vpop.f32.mrf.mxu0
      %v1071 = vadd.f32 0.0, %v1070
      %1072 = vmatmul.f32.gmra.mxu0 %v1009
      %v1073 = vpop.f32.mrf.mxu0
      %v1074 = vadd.f32 0.0, %v1073
      %1075 = vmatmul.f32.gmra.mxu0 %v1012
      %v1076 = vpop.f32.mrf.mxu0
      %v1077 = vadd.f32 0.0, %v1076
      %1078 = vmatmul.f32.gmra.mxu0 %v1015
      %v1079 = vpop.f32.mrf.mxu0
      %v1080 = vadd.f32 0.0, %v1079
      %1081 = vmatmul.f32.gmra.mxu0 %v1018
      %v1082 = vpop.f32.mrf.mxu0
      %v1083 = vadd.f32 0.0, %v1082
      %1084 = vmatmul.f32.gmra.mxu0 %v1021
      %v1085 = vpop.f32.mrf.mxu0
      %v1086 = vadd.f32 0.0, %v1085
      %1087 = vmatmul.f32.gmra.mxu0 %v1024
      %v1088 = vpop.f32.mrf.mxu0
      %v1089 = vadd.f32 0.0, %v1088
      %1090 = vmatmul.f32.gmra.mxu0 %v1027
      %v1091 = vpop.f32.mrf.mxu0
      %v1092 = vadd.f32 0.0, %v1091
      %1093 = vmatmul.f32.gmra.mxu0 %v1030
      %v1094 = vpop.f32.mrf.mxu0
      %v1095 = vadd.f32 0.0, %v1094
      %1096 = vmatmul.f32.gmra.mxu0 %v1033
      %v1097 = vpop.f32.mrf.mxu0
      %v1098 = vadd.f32 0.0, %v1097
      %1099 = vmatmul.f32.gmra.mxu0 %v1036
      %v1100 = vpop.f32.mrf.mxu0
      %v1101 = vadd.f32 0.0, %v1100
      %1102 = vmatmul.f32.gmra.mxu0 %v1039
      %v1103 = vpop.f32.mrf.mxu0
      %v1104 = vadd.f32 0.0, %v1103
      %1105 = vmatmul.f32.gmra.mxu0 %v1042
      %v1106 = vpop.f32.mrf.mxu0
      %v1107 = vadd.f32 0.0, %v1106
      %1108 = vmatmul.f32.gmra.mxu0 %v1045
      %v1109 = vpop.f32.mrf.mxu0
      %v1110 = vadd.f32 0.0, %v1109
      %1111 = vdwg.mxu0
      %v1112 = vld [vmem:[%s5] sm:$0x1]
      %v1114 = vperm.slane %v1112, 0
      %v1116 = vmul.f32 %v1065, %v1114
      %v1117 = vmul.f32 %v1068, %v1114
      %v1118 = vmul.f32 %v1071, %v1114
      %v1119 = vmul.f32 %v1074, %v1114
      %v1120 = vmul.f32 %v1077, %v1114
      %v1121 = vmul.f32 %v1080, %v1114
      %v1122 = vmul.f32 %v1083, %v1114
      %v1123 = vmul.f32 %v1086, %v1114
      %v1124 = vmul.f32 %v1089, %v1114
      %v1125 = vmul.f32 %v1092, %v1114
      %v1126 = vmul.f32 %v1095, %v1114
      %v1127 = vmul.f32 %v1098, %v1114
      %v1128 = vmul.f32 %v1101, %v1114
      %v1129 = vmul.f32 %v1104, %v1114
      %v1130 = vmul.f32 %v1107, %v1114
      %v1131 = vmul.f32 %v1110, %v1114
      %v1132 = vld [vmem:[%s6] sm:$0x1]
      %v1134 = vperm.slane %v1132, 0
      %v1136 = vadd.f32 %v1116, %v1134
      %v1137 = vadd.f32 %v1117, %v1134
      %v1138 = vadd.f32 %v1118, %v1134
      %v1139 = vadd.f32 %v1119, %v1134
      %v1140 = vadd.f32 %v1120, %v1134
      %v1141 = vadd.f32 %v1121, %v1134
      %v1142 = vadd.f32 %v1122, %v1134
      %v1143 = vadd.f32 %v1123, %v1134
      %v1144 = vadd.f32 %v1124, %v1134
      %v1145 = vadd.f32 %v1125, %v1134
      %v1146 = vadd.f32 %v1126, %v1134
      %v1147 = vadd.f32 %v1127, %v1134
      %v1148 = vadd.f32 %v1128, %v1134
      %v1149 = vadd.f32 %v1129, %v1134
      %v1150 = vadd.f32 %v1130, %v1134
      %v1151 = vadd.f32 %v1131, %v1134
      %v1152 = vmax.f32 %v1136, 0.0
      %v1153 = vmax.f32 %v1137, 0.0
      %v1154 = vmax.f32 %v1138, 0.0
      %v1155 = vmax.f32 %v1139, 0.0
      %v1156 = vmax.f32 %v1140, 0.0
      %v1157 = vmax.f32 %v1141, 0.0
      %v1158 = vmax.f32 %v1142, 0.0
      %v1159 = vmax.f32 %v1143, 0.0
      %v1160 = vmax.f32 %v1144, 0.0
      %v1161 = vmax.f32 %v1145, 0.0
      %v1162 = vmax.f32 %v1146, 0.0
      %v1163 = vmax.f32 %v1147, 0.0
      %v1164 = vmax.f32 %v1148, 0.0
      %v1165 = vmax.f32 %v1149, 0.0
      %v1166 = vmax.f32 %v1150, 0.0
      %v1167 = vmax.f32 %v1151, 0.0
      %1168 = vst.msk [vmem:[%s445] sm:$0xff] %vm447, %v1152
      %1169 = vst.msk [vmem:[%s445 + $0x8] sm:$0xff] %vm447, %v1153
      %1170 = vst.msk [vmem:[%s445 + $0x10] sm:$0xff] %vm447, %v1154
      %1171 = vst.msk [vmem:[%s445 + $0x18] sm:$0xff] %vm447, %v1155
      %1172 = vst.msk [vmem:[%s445 + $0x20] sm:$0xff] %vm447, %v1156
      %1173 = vst.msk [vmem:[%s445 + $0x28] sm:$0xff] %vm447, %v1157
      %1174 = vst.msk [vmem:[%s445 + $0x30] sm:$0xff] %vm447, %v1158
      %1175 = vst.msk [vmem:[%s445 + $0x38] sm:$0xff] %vm447, %v1159
      %1176 = vst.msk [vmem:[%s445 + $0x40] sm:$0xff] %vm447, %v1160
      %1177 = vst.msk [vmem:[%s445 + $0x48] sm:$0xff] %vm447, %v1161
      %1178 = vst.msk [vmem:[%s445 + $0x50] sm:$0xff] %vm447, %v1162
      %1179 = vst.msk [vmem:[%s445 + $0x58] sm:$0xff] %vm447, %v1163
      %1180 = vst.msk [vmem:[%s445 + $0x60] sm:$0xff] %vm447, %v1164
      %1181 = vst.msk [vmem:[%s445 + $0x68] sm:$0xff] %vm447, %v1165
      %1182 = vst.msk [vmem:[%s445 + $0x70] sm:$0xff] %vm447, %v1166
      %1183 = vst.msk [vmem:[%s445 + $0x78] sm:$0xff] %vm447, %v1167
      %s1184 = smul.u32 8, %s23
      %p1185 = scmp.lt.s32.totalorder %s22, 1
      %s1186 = scalar_select %p1185, %s22, 1
      %p1187 = scmp.lt.s32.totalorder %s1184, 15
      %s1188 = scalar_select %p1187, %s1184, 15
      %s1189 = smul.addr %s1188, 2
      %s1190 = smul.addr %s1186, 32
      %s1191 = sadd.s32 %s1189, %s1190
      %s1192 = smul.addr %s1191, 8
      %s1193 = scalar_lea.vmem %s7, %s1192
      // Predicated region
      $region49: #{tpu_custom_call.1} parent=47 // pred_check
        %p1194 = pneg %p234
      $region50: #{tpu_custom_call.1} parent=47 // pred_check_branch
        %1196 = sbr.rel (%p1194) target = $region52
      $region51: #{tpu_custom_call.1} parent=47 // pred_region
        %s1197 = smul.u32 8, %s23
      $region52: #{tpu_custom_call.1} parent=47 // pred_fallthru
        _
    $region48: #{tpu_custom_call.1} parent=5 // pred_fallthru
      _
    %p1198 = scmp.le.s32.totalorder 2, %s13
    // Predicated region
    $region53: #{tpu_custom_call.1} parent=5 // pred_check
      %p1199 = pneg %p1198
    $region54: #{tpu_custom_call.1} parent=5 // pred_check_branch
      %1201 = sbr.rel (%p1199) target = $region56
    $region55: #{tpu_custom_call.1} parent=5 // pred_region
      %s1202 = ssub.s32 %s13, 2
      // Predicated region
      $region57: #{tpu_custom_call.1} parent=55 // pred_check
        %p1203 = pneg %p240
      $region58: #{tpu_custom_call.1} parent=55 // pred_check_branch
        %1205 = sbr.rel (%p1203) target = $region60
      $region59: #{tpu_custom_call.1} parent=55 // pred_region
        %s1206 = smul.u32 8, %s25
        %p1207 = scmp.lt.s32.totalorder %s24, 1
        %s1208 = scalar_select %p1207, %s24, 1
        %p1209 = scmp.lt.s32.totalorder %s1206, 15
        %s1210 = scalar_select %p1209, %s1206, 15
        %s1211 = smul.addr %s1210, 2
        %s1212 = smul.addr %s1208, 32
        %s1213 = sadd.s32 %s1211, %s1212
        %s1214 = smul.addr %s1213, 8
        %s1215 = scalar_lea.vmem %s7, %s1214
      $region60: #{tpu_custom_call.1} parent=55 // pred_fallthru
        _
    $region56: #{tpu_custom_call.1} parent=5 // pred_fallthru
      _
  $region6: #{tpu_custom_call.1} parent=0 // loop_footer
    %s17 = sadd.s32 1, %s13
  $region7: #{tpu_custom_call.1} parent=0 // loop_footer_branch
    %12 = sbr.rel target = $region3
  $region8: #{tpu_custom_call.1} parent=0 // loop_exit
    _

</llo_original>
